<compile_context>
chip_gen: v5e
topology: v5e:2x2
jax: 0.10.0
libtpu: 0.0.40
codegen_flags: <defaults>
</compile_context>

<pallas_src>
import functools
import math

import jax
import jax.numpy as jnp
from jax.experimental import pallas as pl
from jax.experimental.pallas import tpu as pltpu


# ----------------------------------------------------------------------------
# Pallas kernel: whole MAGNet_GC MLP fused, one (batch, K-tile) block per step.
# ----------------------------------------------------------------------------
def magnet_gc_kernel(num_layers, hidden,
                     coords_ref, biasp_ref,
                     fw_ref, fb_ref, lw_ref, lb_ref, ow_ref, ob_ref,
                     out_ref):
    """Channels-first block of MAGNet_GC.

    coords_ref: (D, TK)            biasp_ref: (1, TK)
    fw_ref: ((L+1)*H, D)           fb_ref: ((L+1)*H, 1)
    lw_ref: (L, H, H)              lb_ref: (L, H, 1)
    ow_ref: (out_ch, H)            ob_ref: (out_ch, 1)
    out_ref: (out_ch, TK)
    """
    L, H = num_layers, hidden
    coords = coords_ref[...]                        # (D, TK)
    D, TK = coords.shape

    fw = fw_ref[...]                                # (Hc, D), Hc = (L+1)*H
    fb = fb_ref[...]                                # (Hc, 1)

    # All L+1 filter projections fused into one op; a single sin over the slab.
    if D == 1:
        pre = fw * coords                           # (Hc,1)*(1,TK) -> VPU only
    else:
        pre = jnp.dot(fw, coords, preferred_element_type=jnp.float32)
    sin_all = jnp.sin(pre + fb)                     # (Hc, TK)

    # bias_p is a per-position scalar broadcast over channels; hoist the
    # broadcast out of the layer loop.
    biasp_b = jnp.broadcast_to(biasp_ref[...], (H, TK))

    # out = sin(filters[0](coords))
    h = sin_all[0:H, :]
    # out = sin(filters[i](coords)) * linears[i-1](out) + bias_p
    for l in range(L):
        g = sin_all[(l + 1) * H:(l + 2) * H, :]
        lin = jnp.dot(lw_ref[l], h, preferred_element_type=jnp.float32) + lb_ref[l]
        h = g * lin + biasp_b
    # out = output_linear(out)
    y = jnp.dot(ow_ref[...], h, preferred_element_type=jnp.float32) + ob_ref[...]
    out_ref[...] = y.astype(out_ref.dtype)


# ----------------------------------------------------------------------------
# Wrapper: PyTorch layout in, PyTorch layout out.
# ----------------------------------------------------------------------------
def magnet_gc_forward(coords, bias_p, params, *, num_layers, hidden, tk=1024):
    """coords: (B, D, K) f32; bias_p: (1, 1, K).  Returns (B, out_ch, K) f32."""
    B, D, K = coords.shape
    out_ch = params["ow"].shape[0]
    bias_row = jnp.reshape(bias_p, (1, K)).astype(jnp.float32)

    # Lane tile along K: full-K block for small inputs, else a multiple of 128;
    # pad K with zeros instead of asserting divisibility.
    if K <= tk:
        tk_eff, k_pad = K, K
    else:
        tk_eff = max(128, (tk // 128) * 128)
        k_pad = int(pl.cdiv(K, tk_eff)) * tk_eff
    if k_pad != K:
        coords = jnp.pad(coords, ((0, 0), (0, 0), (0, k_pad - K)))
        bias_row = jnp.pad(bias_row, ((0, 0), (0, k_pad - K)))

    grid = (B, k_pad // tk_eff)

    def const_spec(shape):
        zeros = (0,) * len(shape)
        return pl.BlockSpec(shape, lambda b, j: zeros)

    out = pl.pallas_call(
        functools.partial(magnet_gc_kernel, num_layers, hidden),
        out_shape=jax.ShapeDtypeStruct((B, out_ch, k_pad), jnp.float32),
        grid=grid,
        in_specs=[
            pl.BlockSpec((None, D, tk_eff), lambda b, j: (b, 0, j)),   # coords
            pl.BlockSpec((1, tk_eff), lambda b, j: (0, j)),            # bias_p
            const_spec(params["fw"].shape),
            const_spec(params["fb"].shape),
            const_spec(params["lw"].shape),
            const_spec(params["lb"].shape),
            const_spec(params["ow"].shape),
            const_spec(params["ob"].shape),
        ],
        out_specs=pl.BlockSpec((None, out_ch, tk_eff), lambda b, j: (b, 0, j)),
        compiler_params=pltpu.CompilerParams(
            dimension_semantics=("parallel", "parallel")),
    )(coords, bias_row, params["fw"], params["fb"], params["lw"],
      params["lb"], params["ow"], params["ob"])

    return out[:, :, :K] if k_pad != K else out


# ----------------------------------------------------------------------------
# Deterministic parameter construction (mirrors MAGNet_GC.__init__ shapes),
# packed for the channels-first kernel.
# ----------------------------------------------------------------------------
def init_params(key, *, data_dim, hidden, out_ch, num_layers, omega_0, alpha, beta):
    n_filters = num_layers + 1
    ki = iter(jax.random.split(key, 2 * n_filters + num_layers + 1))

    # filters: MAGNetLayer(data_dim -> hidden); Conv1d default init
    # (kaiming_uniform(a=sqrt(5)) -> bound=1/sqrt(fan_in)), weight scaled by
    # 2*pi*omega_0*gamma, bias = 0.  Concatenated into one ((L+1)*H, D) slab.
    fw_list = []
    for layer in range(n_filters):
        a = alpha / (layer + 1)
        gamma = jax.random.gamma(next(ki), a, shape=(hidden, data_dim)) / beta
        bound = 1.0 / math.sqrt(data_dim)
        w = jax.random.uniform(next(ki), (hidden, data_dim),
                               minval=-bound, maxval=bound, dtype=jnp.float32)
        fw_list.append(w * (2.0 * math.pi * omega_0 * gamma.astype(jnp.float32)))
    fw = jnp.concatenate(fw_list, axis=0)                       # ((L+1)*H, D)
    fb = jnp.zeros((n_filters * hidden, 1), jnp.float32)        # ((L+1)*H, 1)

    # hidden linears: kaiming_uniform(nonlinearity='linear'), bias = 1.0
    bound = math.sqrt(3.0 / hidden)
    lw = jnp.stack([
        jax.random.uniform(next(ki), (hidden, hidden),
                           minval=-bound, maxval=bound, dtype=jnp.float32)
        for _ in range(num_layers)
    ], axis=0)                                                  # (L, H, H)
    lb = jnp.ones((num_layers, hidden, 1), jnp.float32)         # (L, H, 1)

    # output linear: kaiming_uniform(nonlinearity='linear'), bias = 0.0
    ow = jax.random.uniform(next(ki), (out_ch, hidden),
                            minval=-bound, maxval=bound, dtype=jnp.float32)
    ob = jnp.zeros((out_ch, 1), jnp.float32)

    return {"fw": fw, "fb": fb, "lw": lw, "lb": lb, "ow": ow, "ob": ob}


# ----------------------------------------------------------------------------
# Pure-JAX reference (same channels-first math) for correctness check.
# ----------------------------------------------------------------------------
def magnet_gc_ref(coords, bias_row, params, num_layers, hidden):
    B, D, K = coords.shape
    L, H = num_layers, hidden
    fw, fb = params["fw"], params["fb"]
    if D == 1:
        pre = fw[None] * coords + fb[None]          # (B, Hc, K)
    else:
        pre = jnp.einsum("hd,bdk->bhk", fw, coords,
                         precision=jax.lax.Precision.HIGHEST) + fb[None]
    sin_all = jnp.sin(pre)
    h = sin_all[:, 0:H, :]
    bias = bias_row[None]                           # (1, 1, K)
    for l in range(L):
        g = sin_all[:, (l + 1) * H:(l + 2) * H, :]
        lin = jnp.einsum("oh,bhk->bok", params["lw"][l], h,
                         precision=jax.lax.Precision.HIGHEST) + params["lb"][l][None]
        h = g * lin + bias
    return jnp.einsum("oh,bhk->bok", params["ow"], h,
                      precision=jax.lax.Precision.HIGHEST) + params["ob"][None]


if __name__ == "__main__":
    # Small synthetic config (data_dim=1 is implied by bias_p shape (1,1,K)).
    data_dim = 1
    kernel_size = 64
    batch = 2
    hidden = 32
    out_channels = 16
    num_layers = 2
    omega_0 = 8.0
    alpha, beta = 6.0, 1.0

    key = jax.random.PRNGKey(0)
    k_coords, k_bias, k_params = jax.random.split(key, 3)

    # coords in the PyTorch (B, data_dim, kernel_size) layout.
    coords = jnp.broadcast_to(
        jnp.linspace(-1.0, 1.0, kernel_size, dtype=jnp.float32)[None, None, :],
        (batch, data_dim, kernel_size),
    )
    coords = coords + 0.01 * jax.random.normal(k_coords, coords.shape,
                                               dtype=jnp.float32)

    params = init_params(
        k_params, data_dim=data_dim, hidden=hidden, out_ch=out_channels,
        num_layers=num_layers, omega_0=omega_0, alpha=alpha, beta=beta,
    )
    # bias_p parameter (zeros at __init__; small nonzero values here so the
    # bias_p path is actually exercised by the check).
    bias_p = 0.1 * jax.random.normal(k_bias, (1, 1, kernel_size),
                                     dtype=jnp.float32)

    out = magnet_gc_forward(coords, bias_p, params,
                            num_layers=num_layers, hidden=hidden)
    out = jax.block_until_ready(out)

    ref = magnet_gc_ref(coords, jnp.reshape(bias_p, (1, kernel_size)),
                        params, num_layers, hidden)

    assert out.shape == (batch, out_channels, kernel_size)
    assert jnp.allclose(out, ref, atol=1e-4, rtol=1e-4), (
        "mismatch vs reference: max abs diff = %e"
        % float(jnp.max(jnp.abs(out - ref))))
    print("KERNEL_OK")
</pallas_src>

<mosaic_0001>
module attributes {stable_mosaic.version = 11 : i64} {
  func.func @magnet_gc_kernel(%arg0: i32, %arg1: i32, %arg2: memref<1x1x64xf32, #tpu.memory_space<vmem>>, %arg3: memref<1x64xf32, #tpu.memory_space<vmem>>, %arg4: memref<96x1xf32, #tpu.memory_space<vmem>>, %arg5: memref<96x1xf32, #tpu.memory_space<vmem>>, %arg6: memref<2x32x32xf32, #tpu.memory_space<vmem>>, %arg7: memref<2x32x1xf32, #tpu.memory_space<vmem>>, %arg8: memref<16x32xf32, #tpu.memory_space<vmem>>, %arg9: memref<16x1xf32, #tpu.memory_space<vmem>>, %arg10: memref<1x16x64xf32, #tpu.memory_space<vmem>>) attributes {dimension_semantics = [#tpu.dimension_semantics<parallel>, #tpu.dimension_semantics<parallel>], iteration_bounds = array<i64: 2, 1>, scalar_prefetch = 0 : i64, scratch_operands = 0 : i64, tpu.core_type = #tpu.core_type<tc>, window_params = [{transform_indices = @transform_0, window_bounds = array<i64: 1, 1, 64>}, {transform_indices = @transform_1, window_bounds = array<i64: 1, 64>}, {pipeline_mode = #tpu.pipeline_mode<synchronous>, transform_indices = @transform_2, window_bounds = array<i64: 96, 1>}, {pipeline_mode = #tpu.pipeline_mode<synchronous>, transform_indices = @transform_3, window_bounds = array<i64: 96, 1>}, {pipeline_mode = #tpu.pipeline_mode<synchronous>, transform_indices = @transform_4, window_bounds = array<i64: 2, 32, 32>}, {pipeline_mode = #tpu.pipeline_mode<synchronous>, transform_indices = @transform_5, window_bounds = array<i64: 2, 32, 1>}, {pipeline_mode = #tpu.pipeline_mode<synchronous>, transform_indices = @transform_6, window_bounds = array<i64: 16, 32>}, {pipeline_mode = #tpu.pipeline_mode<synchronous>, transform_indices = @transform_7, window_bounds = array<i64: 16, 1>}, {transform_indices = @transform_8, window_bounds = array<i64: 1, 16, 64>}]} {
    %c0 = arith.constant 0 : index
    %c0_0 = arith.constant 0 : index
    %c0_1 = arith.constant 0 : index
    %0 = vector.load %arg2[%c0, %c0_0, %c0_1] : memref<1x1x64xf32, #tpu.memory_space<vmem>>, vector<1x1x64xf32>
    %1 = vector.shape_cast %0 : vector<1x1x64xf32> to vector<1x64xf32>
    %c0_2 = arith.constant 0 : index
    %c0_3 = arith.constant 0 : index
    %2 = vector.load %arg4[%c0_2, %c0_3] : memref<96x1xf32, #tpu.memory_space<vmem>>, vector<96x1xf32>
    %c0_4 = arith.constant 0 : index
    %c0_5 = arith.constant 0 : index
    %3 = vector.load %arg5[%c0_4, %c0_5] : memref<96x1xf32, #tpu.memory_space<vmem>>, vector<96x1xf32>
    %4 = vector.broadcast %2 : vector<96x1xf32> to vector<96x64xf32>
    %5 = vector.broadcast %1 : vector<1x64xf32> to vector<96x64xf32>
    %6 = arith.mulf %4, %5 : vector<96x64xf32>
    %7 = vector.broadcast %3 : vector<96x1xf32> to vector<96x64xf32>
    %8 = arith.addf %6, %7 : vector<96x64xf32>
    %9 = math.sin %8 : vector<96x64xf32>
    %c0_6 = arith.constant 0 : index
    %c0_7 = arith.constant 0 : index
    %10 = vector.load %arg3[%c0_6, %c0_7] : memref<1x64xf32, #tpu.memory_space<vmem>>, vector<1x64xf32>
    %11 = vector.shape_cast %10 : vector<1x64xf32> to vector<1x64xf32>
    %12 = vector.broadcast %11 : vector<1x64xf32> to vector<32x64xf32>
    %13 = vector.extract_strided_slice %9 {offsets = [0, 0], sizes = [32, 64], strides = [1, 1]} : vector<96x64xf32> to vector<32x64xf32>
    %14 = vector.extract_strided_slice %9 {offsets = [32, 0], sizes = [32, 64], strides = [1, 1]} : vector<96x64xf32> to vector<32x64xf32>
    %c0_8 = arith.constant 0 : index
    %c0_9 = arith.constant 0 : index
    %c0_10 = arith.constant 0 : index
    %15 = vector.load %arg6[%c0_8, %c0_9, %c0_10] : memref<2x32x32xf32, #tpu.memory_space<vmem>>, vector<1x32x32xf32>
    %16 = vector.shape_cast %15 : vector<1x32x32xf32> to vector<32x32xf32>
    %cst = arith.constant dense<0.000000e+00> : vector<32x64xf32>
    %17 = tpu.matmul %16, %13, %cst {dimension_numbers = #tpu.dot_dimension_numbers<[1], [0], [0], [1], [0, 0, 1, 1], [], []>} : vector<32x32xf32>, vector<32x64xf32>, vector<32x64xf32> -> vector<32x64xf32>
    %c0_11 = arith.constant 0 : index
    %c0_12 = arith.constant 0 : index
    %c0_13 = arith.constant 0 : index
    %18 = vector.load %arg7[%c0_11, %c0_12, %c0_13] : memref<2x32x1xf32, #tpu.memory_space<vmem>>, vector<1x32x1xf32>
    %19 = vector.shape_cast %18 : vector<1x32x1xf32> to vector<32x1xf32>
    %20 = vector.broadcast %19 : vector<32x1xf32> to vector<32x64xf32>
    %21 = arith.addf %17, %20 : vector<32x64xf32>
    %22 = arith.mulf %14, %21 : vector<32x64xf32>
    %23 = arith.addf %22, %12 : vector<32x64xf32>
    %24 = vector.extract_strided_slice %9 {offsets = [64, 0], sizes = [32, 64], strides = [1, 1]} : vector<96x64xf32> to vector<32x64xf32>
    %c1 = arith.constant 1 : index
    %c0_14 = arith.constant 0 : index
    %c0_15 = arith.constant 0 : index
    %25 = vector.load %arg6[%c1, %c0_14, %c0_15] : memref<2x32x32xf32, #tpu.memory_space<vmem>>, vector<1x32x32xf32>
    %26 = vector.shape_cast %25 : vector<1x32x32xf32> to vector<32x32xf32>
    %cst_16 = arith.constant dense<0.000000e+00> : vector<32x64xf32>
    %27 = tpu.matmul %26, %23, %cst_16 {dimension_numbers = #tpu.dot_dimension_numbers<[1], [0], [0], [1], [0, 0, 1, 1], [], []>} : vector<32x32xf32>, vector<32x64xf32>, vector<32x64xf32> -> vector<32x64xf32>
    %c1_17 = arith.constant 1 : index
    %c0_18 = arith.constant 0 : index
    %c0_19 = arith.constant 0 : index
    %28 = vector.load %arg7[%c1_17, %c0_18, %c0_19] : memref<2x32x1xf32, #tpu.memory_space<vmem>>, vector<1x32x1xf32>
    %29 = vector.shape_cast %28 : vector<1x32x1xf32> to vector<32x1xf32>
    %30 = vector.broadcast %29 : vector<32x1xf32> to vector<32x64xf32>
    %31 = arith.addf %27, %30 : vector<32x64xf32>
    %32 = arith.mulf %24, %31 : vector<32x64xf32>
    %33 = arith.addf %32, %12 : vector<32x64xf32>
    %c0_20 = arith.constant 0 : index
    %c0_21 = arith.constant 0 : index
    %34 = vector.load %arg8[%c0_20, %c0_21] : memref<16x32xf32, #tpu.memory_space<vmem>>, vector<16x32xf32>
    %cst_22 = arith.constant dense<0.000000e+00> : vector<16x64xf32>
    %35 = tpu.matmul %34, %33, %cst_22 {dimension_numbers = #tpu.dot_dimension_numbers<[1], [0], [0], [1], [0, 0, 1, 1], [], []>} : vector<16x32xf32>, vector<32x64xf32>, vector<16x64xf32> -> vector<16x64xf32>
    %c0_23 = arith.constant 0 : index
    %c0_24 = arith.constant 0 : index
    %36 = vector.load %arg9[%c0_23, %c0_24] : memref<16x1xf32, #tpu.memory_space<vmem>>, vector<16x1xf32>
    %37 = vector.broadcast %36 : vector<16x1xf32> to vector<16x64xf32>
    %38 = arith.addf %35, %37 : vector<16x64xf32>
    %c0_25 = arith.constant 0 : index
    %c0_26 = arith.constant 0 : index
    %c0_27 = arith.constant 0 : index
    %39 = vector.load %arg10[%c0_25, %c0_26, %c0_27] : memref<1x16x64xf32, #tpu.memory_space<vmem>>, vector<1x16x64xf32>
    %40 = vector.shape_cast %39 : vector<1x16x64xf32> to vector<16x64xf32>
    %41 = vector.shape_cast %38 : vector<16x64xf32> to vector<1x16x64xf32>
    tpu.vector_store %arg10[%c0_25, %c0_26, %c0_27], %41 {strides = array<i32>} : memref<1x16x64xf32, #tpu.memory_space<vmem>>, vector<1x16x64xf32>,
    return
  }
  func.func @transform_0(%arg0: i32, %arg1: i32) -> (i32, i32, i32) {
    %c0_i32 = arith.constant 0 : i32
    %c0_i32_0 = arith.constant 0 : i32
    return %arg0, %c0_i32, %arg1 : i32, i32, i32
  }
  func.func @transform_1(%arg0: i32, %arg1: i32) -> (i32, i32) {
    %c0_i32 = arith.constant 0 : i32
    %c0_i32_0 = arith.constant 0 : i32
    return %c0_i32, %arg1 : i32, i32
  }
  func.func @transform_2(%arg0: i32, %arg1: i32) -> (i32, i32) {
    %c0_i32 = arith.constant 0 : i32
    %c0_i32_0 = arith.constant 0 : i32
    %c0_i32_1 = arith.constant 0 : i32
    return %c0_i32, %c0_i32_0 : i32, i32
  }
  func.func @transform_3(%arg0: i32, %arg1: i32) -> (i32, i32) {
    %c0_i32 = arith.constant 0 : i32
    %c0_i32_0 = arith.constant 0 : i32
    %c0_i32_1 = arith.constant 0 : i32
    return %c0_i32, %c0_i32_0 : i32, i32
  }
  func.func @transform_4(%arg0: i32, %arg1: i32) -> (i32, i32, i32) {
    %c0_i32 = arith.constant 0 : i32
    %c0_i32_0 = arith.constant 0 : i32
    %c0_i32_1 = arith.constant 0 : i32
    %c0_i32_2 = arith.constant 0 : i32
    return %c0_i32, %c0_i32_0, %c0_i32_1 : i32, i32, i32
  }
  func.func @transform_5(%arg0: i32, %arg1: i32) -> (i32, i32, i32) {
    %c0_i32 = arith.constant 0 : i32
    %c0_i32_0 = arith.constant 0 : i32
    %c0_i32_1 = arith.constant 0 : i32
    %c0_i32_2 = arith.constant 0 : i32
    return %c0_i32, %c0_i32_0, %c0_i32_1 : i32, i32, i32
  }
  func.func @transform_6(%arg0: i32, %arg1: i32) -> (i32, i32) {
    %c0_i32 = arith.constant 0 : i32
    %c0_i32_0 = arith.constant 0 : i32
    %c0_i32_1 = arith.constant 0 : i32
    return %c0_i32, %c0_i32_0 : i32, i32
  }
  func.func @transform_7(%arg0: i32, %arg1: i32) -> (i32, i32) {
    %c0_i32 = arith.constant 0 : i32
    %c0_i32_0 = arith.constant 0 : i32
    %c0_i32_1 = arith.constant 0 : i32
    return %c0_i32, %c0_i32_0 : i32, i32
  }
  func.func @transform_8(%arg0: i32, %arg1: i32) -> (i32, i32, i32) {
    %c0_i32 = arith.constant 0 : i32
    %c0_i32_0 = arith.constant 0 : i32
    return %arg0, %c0_i32, %arg1 : i32, i32, i32
  }
}

</mosaic_0001>

<llo_original>
// kernel: tpu_custom_call.1
$region0: #{tpu_custom_call.1}
  #allocation0 [shape = 'u32[]', space=smem, size = 0x4, offset = 0x4, fixed_abs, tag = 'smem constant byte address 0x4 - core index']
  #allocation1 [shape = 'u32[72,128]{1,0:T(1,128)}', space=vmem, size = 0x9000, scoped, tag = 'internal scratch']
  %s0 = inlined_call_operand.vmem [shape: f32[2,1,64], index: 0, kind: input, shape index: {}]
  %s1 = inlined_call_operand.vmem [shape: f32[1,64], index: 1, kind: input, shape index: {}]
  %s2 = inlined_call_operand.vmem [shape: f32[96,1], index: 2, kind: input, shape index: {}]
  %s3 = inlined_call_operand.vmem [shape: f32[96,1], index: 3, kind: input, shape index: {}]
  %s4 = inlined_call_operand.vmem [shape: f32[2,32,32], index: 4, kind: input, shape index: {}]
  %s5 = inlined_call_operand.vmem [shape: f32[2,32,1], index: 5, kind: input, shape index: {}]
  %s6 = inlined_call_operand.vmem [shape: f32[16,32], index: 6, kind: input, shape index: {}]
  %s7 = inlined_call_operand.vmem [shape: f32[16,1], index: 7, kind: input, shape index: {}]
  %s8 = inlined_call_operand.hbm [shape: f32[2,16,64], index: 8, kind: output, shape index: {}]
  %s9 = sld [smem:[#allocation0]]
  $region65: #{tpu_custom_call.1} parent=0
    _
  %s11 = ssub.s32 1, %s9
  %s12 = scalar_select 0, %s11, %s9
  $region1: #{tpu_custom_call.1} parent=0
    #allocation2 [shape = 'u8[16384]{0}', space=vmem, size = 0x4000, scoped, tag = 'output window, operand 0']
    #allocation3 [shape = 's32[2]{0}', space=sflag, size = 0x8, scoped, tag = 'scoped memory for tpu_custom_call.1']
    %13 = vsyncpa [#allocation3], 0
    %s14 = scalar_lea.sflag [#allocation3], 1
    %15 = vsyncpa %s14, 0
    loop: start=0, step=1, limit=4
    $region2: #{tpu_custom_call.1} parent=1 // loop_pre_header
      _
    $region3: #{tpu_custom_call.1} parent=1 // loop_header
      %s17 = sphi 0, %s21
      %p18 = scmp.ge.s32.totalorder %s17, 4
      %s24 = sphi 0, %s36
      %s25 = sphi 0, %s32
      %s26 = sphi 0, %s24
      %s27 = sphi 0, %s25
      %s28 = sphi 0, %s26
      %s29 = sphi 0, %s27
      %s41 = sphi 0, %s43
      %s44 = sphi 0, %s41
      %s45 = sphi 0, %s44
      %s61 = sphi 0, %s45
      %s67 = sphi 0, %s69
      %s70 = sphi 0, %s67
      %s71 = sphi 0, %s70
      %s87 = sphi 0, %s71
      %s91 = sphi 0, %s91
      %s93 = sphi 0, %s91
      %s94 = sphi 0, %s93
      %s108 = sphi 0, %s94
      %s112 = sphi 0, %s112
      %s114 = sphi 0, %s112
      %s115 = sphi 0, %s114
      %s129 = sphi 0, %s115
      %s133 = sphi 0, %s133
      %s135 = sphi 0, %s133
      %s136 = sphi 0, %s135
      %s150 = sphi 0, %s136
      %s154 = sphi 0, %s154
      %s156 = sphi 0, %s154
      %s157 = sphi 0, %s156
      %s171 = sphi 0, %s157
      %s175 = sphi 0, %s175
      %s177 = sphi 0, %s175
      %s178 = sphi 0, %s177
      %s192 = sphi 0, %s178
      %s196 = sphi 0, %s196
      %s198 = sphi 0, %s196
      %s199 = sphi 0, %s198
      %s213 = sphi 0, %s199
      %s221 = sphi 0, %s223
      %s224 = sphi 0, %s221
      %s225 = sphi 0, %s224
      %s241 = sphi 0, %s225
    $region4: #{tpu_custom_call.1} parent=1 // loop_header_branch
      %20 = sbr.rel (%p18) target = $region8
    $region5: #{tpu_custom_call.1} parent=1 // loop_body
      %s22 = ssub.s32 %s17, 1
      %s23 = ssub.s32 %s17, 2
      %s30 = sadd.s32 1, %s25
      %p31 = scmp.ge.s32.totalorder %s30, 1
      %s32 = scalar_select %p31, 0, %s30
      %s33 = sadd.s32 1, %s24
      %s34 = scalar_select %p31, %s33, %s24
      %p35 = scmp.ge.s32.totalorder %s34, 2
      %s36 = scalar_select %p35, 0, %s34
      %s37 = ssub.s32 %s24, %s36
      %s38 = ssub.s32 %s25, %s32
      %s39 = sor.u32 %s37, %s38
      %p40 = scmp.eq.s32.totalorder %s39, 0
      %s42 = sadd.s32 %s41, 1
      %s43 = scalar_select %p40, %s41, %s42
      %p46 = pneg %p40
      %p47 = scmp.eq.s32.totalorder %s17, 1
      %p48 = por %p46, %p47
      %p49 = scmp.ne.s32.totalorder %s41, %s44
      %p50 = scmp.eq.s32.totalorder %s17, 0
      %p51 = por %p49, %p50
      %p52 = scmp.ne.s32.totalorder %s41, %s44
      %p53 = scmp.eq.s32.totalorder %s22, 1
      %p54 = por %p52, %p53
      %p55 = scmp.ne.s32.totalorder %s44, %s45
      %p56 = scmp.eq.s32.totalorder %s22, 0
      %p57 = por %p55, %p56
      %p58 = scmp.ne.s32.totalorder %s44, %s45
      %p59 = scmp.eq.s32.totalorder %s23, 1
      %p60 = por %p58, %p59
      %p62 = scmp.ne.s32.totalorder %s45, %s61
      %p63 = scmp.eq.s32.totalorder %s23, 0
      %p64 = por %p62, %p63
      %s65 = ssub.s32 %s25, %s32
      %p66 = scmp.eq.s32.totalorder %s65, 0
      %s68 = sadd.s32 %s67, 1
      %s69 = scalar_select %p66, %s67, %s68
      %p72 = pneg %p66
      %p73 = scmp.eq.s32.totalorder %s17, 1
      %p74 = por %p72, %p73
      %p75 = scmp.ne.s32.totalorder %s67, %s70
      %p76 = scmp.eq.s32.totalorder %s17, 0
      %p77 = por %p75, %p76
      %p78 = scmp.ne.s32.totalorder %s67, %s70
      %p79 = scmp.eq.s32.totalorder %s22, 1
      %p80 = por %p78, %p79
      %p81 = scmp.ne.s32.totalorder %s70, %s71
      %p82 = scmp.eq.s32.totalorder %s22, 0
      %p83 = por %p81, %p82
      %p84 = scmp.ne.s32.totalorder %s70, %s71
      %p85 = scmp.eq.s32.totalorder %s23, 1
      %p86 = por %p84, %p85
      %p88 = scmp.ne.s32.totalorder %s71, %s87
      %p89 = scmp.eq.s32.totalorder %s23, 0
      %p90 = por %p88, %p89
      %s92 = sadd.s32 %s91, 1
      %p95 = scmp.eq.s32.totalorder %s17, 1
      %p96 = scmp.ne.s32.totalorder %s91, %s93
      %p97 = scmp.eq.s32.totalorder %s17, 0
      %p98 = por %p96, %p97
      %p99 = scmp.ne.s32.totalorder %s91, %s93
      %p100 = scmp.eq.s32.totalorder %s22, 1
      %p101 = por %p99, %p100
      %p102 = scmp.ne.s32.totalorder %s93, %s94
      %p103 = scmp.eq.s32.totalorder %s22, 0
      %p104 = por %p102, %p103
      %p105 = scmp.ne.s32.totalorder %s93, %s94
      %p106 = scmp.eq.s32.totalorder %s23, 1
      %p107 = por %p105, %p106
      %p109 = scmp.ne.s32.totalorder %s94, %s108
      %p110 = scmp.eq.s32.totalorder %s23, 0
      %p111 = por %p109, %p110
      %s113 = sadd.s32 %s112, 1
      %p116 = scmp.eq.s32.totalorder %s17, 1
      %p117 = scmp.ne.s32.totalorder %s112, %s114
      %p118 = scmp.eq.s32.totalorder %s17, 0
      %p119 = por %p117, %p118
      %p120 = scmp.ne.s32.totalorder %s112, %s114
      %p121 = scmp.eq.s32.totalorder %s22, 1
      %p122 = por %p120, %p121
      %p123 = scmp.ne.s32.totalorder %s114, %s115
      %p124 = scmp.eq.s32.totalorder %s22, 0
      %p125 = por %p123, %p124
      %p126 = scmp.ne.s32.totalorder %s114, %s115
      %p127 = scmp.eq.s32.totalorder %s23, 1
      %p128 = por %p126, %p127
      %p130 = scmp.ne.s32.totalorder %s115, %s129
      %p131 = scmp.eq.s32.totalorder %s23, 0
      %p132 = por %p130, %p131
      %s134 = sadd.s32 %s133, 1
      %p137 = scmp.eq.s32.totalorder %s17, 1
      %p138 = scmp.ne.s32.totalorder %s133, %s135
      %p139 = scmp.eq.s32.totalorder %s17, 0
      %p140 = por %p138, %p139
      %p141 = scmp.ne.s32.totalorder %s133, %s135
      %p142 = scmp.eq.s32.totalorder %s22, 1
      %p143 = por %p141, %p142
      %p144 = scmp.ne.s32.totalorder %s135, %s136
      %p145 = scmp.eq.s32.totalorder %s22, 0
      %p146 = por %p144, %p145
      %p147 = scmp.ne.s32.totalorder %s135, %s136
      %p148 = scmp.eq.s32.totalorder %s23, 1
      %p149 = por %p147, %p148
      %p151 = scmp.ne.s32.totalorder %s136, %s150
      %p152 = scmp.eq.s32.totalorder %s23, 0
      %p153 = por %p151, %p152
      %s155 = sadd.s32 %s154, 1
      %p158 = scmp.eq.s32.totalorder %s17, 1
      %p159 = scmp.ne.s32.totalorder %s154, %s156
      %p160 = scmp.eq.s32.totalorder %s17, 0
      %p161 = por %p159, %p160
      %p162 = scmp.ne.s32.totalorder %s154, %s156
      %p163 = scmp.eq.s32.totalorder %s22, 1
      %p164 = por %p162, %p163
      %p165 = scmp.ne.s32.totalorder %s156, %s157
      %p166 = scmp.eq.s32.totalorder %s22, 0
      %p167 = por %p165, %p166
      %p168 = scmp.ne.s32.totalorder %s156, %s157
      %p169 = scmp.eq.s32.totalorder %s23, 1
      %p170 = por %p168, %p169
      %p172 = scmp.ne.s32.totalorder %s157, %s171
      %p173 = scmp.eq.s32.totalorder %s23, 0
      %p174 = por %p172, %p173
      %s176 = sadd.s32 %s175, 1
      %p179 = scmp.eq.s32.totalorder %s17, 1
      %p180 = scmp.ne.s32.totalorder %s175, %s177
      %p181 = scmp.eq.s32.totalorder %s17, 0
      %p182 = por %p180, %p181
      %p183 = scmp.ne.s32.totalorder %s175, %s177
      %p184 = scmp.eq.s32.totalorder %s22, 1
      %p185 = por %p183, %p184
      %p186 = scmp.ne.s32.totalorder %s177, %s178
      %p187 = scmp.eq.s32.totalorder %s22, 0
      %p188 = por %p186, %p187
      %p189 = scmp.ne.s32.totalorder %s177, %s178
      %p190 = scmp.eq.s32.totalorder %s23, 1
      %p191 = por %p189, %p190
      %p193 = scmp.ne.s32.totalorder %s178, %s192
      %p194 = scmp.eq.s32.totalorder %s23, 0
      %p195 = por %p193, %p194
      %s197 = sadd.s32 %s196, 1
      %p200 = scmp.eq.s32.totalorder %s17, 1
      %p201 = scmp.ne.s32.totalorder %s196, %s198
      %p202 = scmp.eq.s32.totalorder %s17, 0
      %p203 = por %p201, %p202
      %p204 = scmp.ne.s32.totalorder %s196, %s198
      %p205 = scmp.eq.s32.totalorder %s22, 1
      %p206 = por %p204, %p205
      %p207 = scmp.ne.s32.totalorder %s198, %s199
      %p208 = scmp.eq.s32.totalorder %s22, 0
      %p209 = por %p207, %p208
      %p210 = scmp.ne.s32.totalorder %s198, %s199
      %p211 = scmp.eq.s32.totalorder %s23, 1
      %p212 = por %p210, %p211
      %p214 = scmp.ne.s32.totalorder %s199, %s213
      %p215 = scmp.eq.s32.totalorder %s23, 0
      %p216 = por %p214, %p215
      %s217 = ssub.s32 %s24, %s36
      %s218 = ssub.s32 %s25, %s32
      %s219 = sor.u32 %s217, %s218
      %p220 = scmp.eq.s32.totalorder %s219, 0
      %s222 = sadd.s32 %s221, 1
      %s223 = scalar_select %p220, %s221, %s222
      %p226 = pneg %p220
      %p227 = scmp.eq.s32.totalorder %s17, 1
      %p228 = por %p226, %p227
      %p229 = scmp.ne.s32.totalorder %s221, %s224
      %p230 = scmp.eq.s32.totalorder %s17, 0
      %p231 = por %p229, %p230
      %p232 = scmp.ne.s32.totalorder %s221, %s224
      %p233 = scmp.eq.s32.totalorder %s22, 1
      %p234 = por %p232, %p233
      %p235 = scmp.ne.s32.totalorder %s224, %s225
      %p236 = scmp.eq.s32.totalorder %s22, 0
      %p237 = por %p235, %p236
      %p238 = scmp.ne.s32.totalorder %s224, %s225
      %p239 = scmp.eq.s32.totalorder %s23, 1
      %p240 = por %p238, %p239
      %p242 = scmp.ne.s32.totalorder %s225, %s241
      %p243 = scmp.eq.s32.totalorder %s23, 0
      %p244 = por %p242, %p243
      %p245 = scmp.le.s32.totalorder 1, %s17
      %p246 = scmp.lt.s32.totalorder %s17, 3
      %p247 = pnand %p245, %p246
      %p248 = pneg %p247
      // Predicated region
      $region9: #{tpu_custom_call.1} parent=5 // pred_check
        _
      $region10: #{tpu_custom_call.1} parent=5 // pred_check_branch
        %250 = sbr.rel (%p247) target = $region12
      $region11: #{tpu_custom_call.1} parent=5 // pred_region
        %s251 = ssub.s32 %s17, 1
        // Predicated region
        $region13: #{tpu_custom_call.1} parent=11 // pred_check
          %p252 = pneg %p83
        $region14: #{tpu_custom_call.1} parent=11 // pred_check_branch
          %254 = sbr.rel (%p252) target = $region16
        $region15: #{tpu_custom_call.1} parent=11 // pred_region
          %p255 = scmp.lt.s32.totalorder %s27, 0
          %s256 = scalar_select %p255, %s27, 0
          %s257 = scalar_lea.vmem %s1, %s256
        $region16: #{tpu_custom_call.1} parent=11 // pred_fallthru
          _
        // Predicated region
        $region17: #{tpu_custom_call.1} parent=11 // pred_check
          %p258 = pneg %p104
        $region18: #{tpu_custom_call.1} parent=11 // pred_check_branch
          %260 = sbr.rel (%p258) target = $region20
        $region19: #{tpu_custom_call.1} parent=11 // pred_region
          _
        $region20: #{tpu_custom_call.1} parent=11 // pred_fallthru
          _
        // Predicated region
        $region21: #{tpu_custom_call.1} parent=11 // pred_check
          %p261 = pneg %p125
        $region22: #{tpu_custom_call.1} parent=11 // pred_check_branch
          %263 = sbr.rel (%p261) target = $region24
        $region23: #{tpu_custom_call.1} parent=11 // pred_region
          _
        $region24: #{tpu_custom_call.1} parent=11 // pred_fallthru
          _
        // Predicated region
        $region25: #{tpu_custom_call.1} parent=11 // pred_check
          %p264 = pneg %p146
        $region26: #{tpu_custom_call.1} parent=11 // pred_check_branch
          %266 = sbr.rel (%p264) target = $region28
        $region27: #{tpu_custom_call.1} parent=11 // pred_region
          _
        $region28: #{tpu_custom_call.1} parent=11 // pred_fallthru
          _
        // Predicated region
        $region29: #{tpu_custom_call.1} parent=11 // pred_check
          %p267 = pneg %p167
        $region30: #{tpu_custom_call.1} parent=11 // pred_check_branch
          %269 = sbr.rel (%p267) target = $region32
        $region31: #{tpu_custom_call.1} parent=11 // pred_region
          _
        $region32: #{tpu_custom_call.1} parent=11 // pred_fallthru
          _
        // Predicated region
        $region33: #{tpu_custom_call.1} parent=11 // pred_check
          %p270 = pneg %p188
        $region34: #{tpu_custom_call.1} parent=11 // pred_check_branch
          %272 = sbr.rel (%p270) target = $region36
        $region35: #{tpu_custom_call.1} parent=11 // pred_region
          _
        $region36: #{tpu_custom_call.1} parent=11 // pred_fallthru
          _
        // Predicated region
        $region37: #{tpu_custom_call.1} parent=11 // pred_check
          %p273 = pneg %p209
        $region38: #{tpu_custom_call.1} parent=11 // pred_check_branch
          %275 = sbr.rel (%p273) target = $region40
        $region39: #{tpu_custom_call.1} parent=11 // pred_region
          _
        $region40: #{tpu_custom_call.1} parent=11 // pred_fallthru
          _
      $region12: #{tpu_custom_call.1} parent=5 // pred_fallthru
        _
      %p276 = scmp.lt.s32.totalorder %s17, 2
      // Predicated region
      $region41: #{tpu_custom_call.1} parent=5 // pred_check
        %p277 = pneg %p276
      $region42: #{tpu_custom_call.1} parent=5 // pred_check_branch
        %279 = sbr.rel (%p277) target = $region44
      $region43: #{tpu_custom_call.1} parent=5 // pred_region
        // Predicated region
        $region45: #{tpu_custom_call.1} parent=43 // pred_check
          %p280 = pneg %p51
        $region46: #{tpu_custom_call.1} parent=43 // pred_check_branch
          %282 = sbr.rel (%p280) target = $region48
        $region47: #{tpu_custom_call.1} parent=43 // pred_region
          %p283 = scmp.lt.s32.totalorder %s24, 1
          %s284 = scalar_select %p283, %s24, 1
          %p285 = scmp.lt.s32.totalorder %s25, 0
          %s286 = scalar_select %p285, %s25, 0
          %s287 = sadd.s32 %s286, %s284
          %s288 = scalar_lea.vmem %s0, %s287
        $region48: #{tpu_custom_call.1} parent=43 // pred_fallthru
          _
      $region44: #{tpu_custom_call.1} parent=5 // pred_fallthru
        _
      %p289 = scmp.le.s32.totalorder 1, %s17
      %p290 = scmp.lt.s32.totalorder %s17, 3
      %p291 = pnand %p289, %p290
      %p292 = pneg %p291
      // Predicated region
      $region49: #{tpu_custom_call.1} parent=5 // pred_check
        _
      $region50: #{tpu_custom_call.1} parent=5 // pred_check_branch
        %294 = sbr.rel (%p291) target = $region52
      $region51: #{tpu_custom_call.1} parent=5 // pred_region
        %s295 = ssub.s32 %s17, 1
        %p296 = scmp.lt.s32.totalorder %s26, 1
        %s297 = scalar_select %p296, %s26, 1
        %p298 = scmp.lt.s32.totalorder %s27, 0
        %s299 = scalar_select %p298, %s27, 0
        %s300 = sadd.s32 %s299, %s297
        %s301 = scalar_lea.vmem %s0, %s300
        %p302 = pneg %p57
        %p303 = pneg %p54
        %p304 = scmp.lt.s32.totalorder %s27, 0
        %s305 = scalar_select %p304, %s27, 0
        %s306 = scalar_lea.vmem %s1, %s305
        %p307 = pneg %p83
        %p308 = pneg %p80
        %p309 = pneg %p104
        %p310 = pneg %p101
        %p311 = pneg %p125
        %p312 = pneg %p122
        %p313 = pneg %p146
        %p314 = pneg %p143
        %p315 = pneg %p167
        %p316 = pneg %p164
        %p317 = pneg %p188
        %p318 = pneg %p185
        %p319 = pneg %p209
        %p320 = pneg %p206
        %p321 = pneg %p237
        %p322 = pneg %p234
        %s323 = sand.u32 %s224, 1
        %s324 = scalar_lea.sflag [#allocation3], %s323
        %s325 = sand.u32 %s224, 1
        %s326 = smul.addr %s325, 16
        %s327 = scalar_lea.vmem [#allocation2], %s326
        %p328 = scmp.lt.s32.totalorder %s26, 1
        %s329 = scalar_select %p328, %s26, 1
        %p330 = scmp.lt.s32.totalorder %s27, 0
        %s331 = scalar_select %p330, %s27, 0
        %s332 = sadd.s32 %s331, %s329
        %s333 = scalar_lea.vmem %s0, %s332
        %p334 = scmp.lt.s32.totalorder %s27, 0
        %s335 = scalar_select %p334, %s27, 0
        %s336 = scalar_lea.vmem %s1, %s335
        %v337 = vld [vmem:[%s333] sm:$0x1]
        %v338 = vld [vmem:[%s2] sm:$0xff]
        %v339 = vld [vmem:[%s2 + $0x8] sm:$0xff]
        %v340 = vld [vmem:[%s2 + $0x10] sm:$0xff]
        %v341 = vld [vmem:[%s2 + $0x18] sm:$0xff]
        %v342 = vld [vmem:[%s2 + $0x20] sm:$0xff]
        %v343 = vld [vmem:[%s2 + $0x28] sm:$0xff]
        %v344 = vld [vmem:[%s2 + $0x30] sm:$0xff]
        %v345 = vld [vmem:[%s2 + $0x38] sm:$0xff]
        %v346 = vld [vmem:[%s2 + $0x40] sm:$0xff]
        %v347 = vld [vmem:[%s2 + $0x48] sm:$0xff]
        %v348 = vld [vmem:[%s2 + $0x50] sm:$0xff]
        %v349 = vld [vmem:[%s2 + $0x58] sm:$0xff]
        %v350 = vld [vmem:[%s3] sm:$0xff]
        %v351 = vld [vmem:[%s3 + $0x8] sm:$0xff]
        %v352 = vld [vmem:[%s3 + $0x10] sm:$0xff]
        %v353 = vld [vmem:[%s3 + $0x18] sm:$0xff]
        %v354 = vld [vmem:[%s3 + $0x20] sm:$0xff]
        %v355 = vld [vmem:[%s3 + $0x28] sm:$0xff]
        %v356 = vld [vmem:[%s3 + $0x30] sm:$0xff]
        %v357 = vld [vmem:[%s3 + $0x38] sm:$0xff]
        %v358 = vld [vmem:[%s3 + $0x40] sm:$0xff]
        %v359 = vld [vmem:[%s3 + $0x48] sm:$0xff]
        %v360 = vld [vmem:[%s3 + $0x50] sm:$0xff]
        %v361 = vld [vmem:[%s3 + $0x58] sm:$0xff]
        %363 = vset.pattern.permute.xlu0 0
        %364 = vperm.xlu0 %363, %v338
        %v365 = vpop.permute.xlu0 %364
        %368 = vset.pattern.permute.xlu0 0
        %369 = vperm.xlu0 %368, %v339
        %v370 = vpop.permute.xlu0 %369
        %373 = vset.pattern.permute.xlu0 0
        %374 = vperm.xlu0 %373, %v340
        %v375 = vpop.permute.xlu0 %374
        %378 = vset.pattern.permute.xlu0 0
        %379 = vperm.xlu0 %378, %v341
        %v380 = vpop.permute.xlu0 %379
        %383 = vset.pattern.permute.xlu0 0
        %384 = vperm.xlu0 %383, %v342
        %v385 = vpop.permute.xlu0 %384
        %388 = vset.pattern.permute.xlu0 0
        %389 = vperm.xlu0 %388, %v343
        %v390 = vpop.permute.xlu0 %389
        %393 = vset.pattern.permute.xlu0 0
        %394 = vperm.xlu0 %393, %v344
        %v395 = vpop.permute.xlu0 %394
        %398 = vset.pattern.permute.xlu0 0
        %399 = vperm.xlu0 %398, %v345
        %v400 = vpop.permute.xlu0 %399
        %403 = vset.pattern.permute.xlu0 0
        %404 = vperm.xlu0 %403, %v346
        %v405 = vpop.permute.xlu0 %404
        %408 = vset.pattern.permute.xlu0 0
        %409 = vperm.xlu0 %408, %v347
        %v410 = vpop.permute.xlu0 %409
        %413 = vset.pattern.permute.xlu0 0
        %414 = vperm.xlu0 %413, %v348
        %v415 = vpop.permute.xlu0 %414
        %418 = vset.pattern.permute.xlu0 0
        %419 = vperm.xlu0 %418, %v349
        %v420 = vpop.permute.xlu0 %419
        %v423 = vperm.slane %v337, 0
        %v425 = vmul.f32 %v365, %v423
        %v426 = vmul.f32 %v370, %v423
        %v427 = vmul.f32 %v375, %v423
        %v428 = vmul.f32 %v380, %v423
        %v429 = vmul.f32 %v385, %v423
        %v430 = vmul.f32 %v390, %v423
        %v431 = vmul.f32 %v395, %v423
        %v432 = vmul.f32 %v400, %v423
        %v433 = vmul.f32 %v405, %v423
        %v434 = vmul.f32 %v410, %v423
        %v435 = vmul.f32 %v415, %v423
        %v436 = vmul.f32 %v420, %v423
        %438 = vset.pattern.permute.xlu0 0
        %439 = vperm.xlu0 %438, %v350
        %v440 = vpop.permute.xlu0 %439
        %443 = vset.pattern.permute.xlu0 0
        %444 = vperm.xlu0 %443, %v351
        %v445 = vpop.permute.xlu0 %444
        %448 = vset.pattern.permute.xlu0 0
        %449 = vperm.xlu0 %448, %v352
        %v450 = vpop.permute.xlu0 %449
        %453 = vset.pattern.permute.xlu0 0
        %454 = vperm.xlu0 %453, %v353
        %v455 = vpop.permute.xlu0 %454
        %458 = vset.pattern.permute.xlu0 0
        %459 = vperm.xlu0 %458, %v354
        %v460 = vpop.permute.xlu0 %459
        %463 = vset.pattern.permute.xlu0 0
        %464 = vperm.xlu0 %463, %v355
        %v465 = vpop.permute.xlu0 %464
        %468 = vset.pattern.permute.xlu0 0
        %469 = vperm.xlu0 %468, %v356
        %v470 = vpop.permute.xlu0 %469
        %473 = vset.pattern.permute.xlu0 0
        %474 = vperm.xlu0 %473, %v357
        %v475 = vpop.permute.xlu0 %474
        %478 = vset.pattern.permute.xlu0 0
        %479 = vperm.xlu0 %478, %v358
        %v480 = vpop.permute.xlu0 %479
        %483 = vset.pattern.permute.xlu0 0
        %484 = vperm.xlu0 %483, %v359
        %v485 = vpop.permute.xlu0 %484
        %488 = vset.pattern.permute.xlu0 0
        %489 = vperm.xlu0 %488, %v360
        %v490 = vpop.permute.xlu0 %489
        %493 = vset.pattern.permute.xlu0 0
        %494 = vperm.xlu0 %493, %v361
        %v495 = vpop.permute.xlu0 %494
        %v497 = vadd.f32 %v425, %v440
        %v498 = vadd.f32 %v426, %v445
        %v499 = vadd.f32 %v427, %v450
        %v500 = vadd.f32 %v428, %v455
        %v501 = vadd.f32 %v429, %v460
        %v502 = vadd.f32 %v430, %v465
        %v503 = vadd.f32 %v431, %v470
        %v504 = vadd.f32 %v432, %v475
        %v505 = vadd.f32 %v433, %v480
        %v506 = vadd.f32 %v434, %v485
        %v507 = vadd.f32 %v435, %v490
        %v508 = vadd.f32 %v436, %v495
        %v509 = vand.u32 2147483647, %v497
        %vm510 = vcmp.le.f32.partialorder %v509, 0.7853982
        %vm511 = vcmp.lt.s32.totalorder %v497, 0
        %v512 = vand.u32 %v497, 2139095040
        %v513 = vshrl.u32 %v512, 23
        %v514 = vsub.s32 %v513, 127
        %v515 = vand.u32 2147483647, %v497
        %v516 = vand.u32 %v515, 8388607
        %v517 = vor.u32 %v516, 8388608
        %v518 = vsub.s32 0, %v517
        %v519 = vadd.s32 %v514, 1
        %vm520 = vcmp.gt.s32.totalorder %v519, 0
        %v521 = vsel %vm520, %v519, 0
        %v522 = vshrl.u32 %v521, 5
        %v523 = vand.u32 %v521, 31
        %v524 = vsub.s32 32, %v523
        %v525 = vshrl.u32 683565275, %v524
        %v526 = vshll.u32 683565275, %v523
        %v527 = vshrl.u32 2475754826, %v524
        %v528 = vor.u32 %v526, %v527
        %v529 = vshll.u32 2475754826, %v523
        %v530 = vshrl.u32 2131351028, %v524
        %v531 = vor.u32 %v529, %v530
        %v532 = vshll.u32 2131351028, %v523
        %v533 = vshrl.u32 2102212464, %v524
        %v534 = vor.u32 %v532, %v533
        %v535 = vshll.u32 2102212464, %v523
        %v536 = vshrl.u32 920167782, %v524
        %v537 = vor.u32 %v535, %v536
        %v538 = vshll.u32 920167782, %v523
        %v539 = vshrl.u32 1326507024, %v524
        %v540 = vor.u32 %v538, %v539
        %vm541 = vcmp.lt.s32.totalorder %v522, 1
        %vm542 = vcmp.lt.s32.totalorder %v522, 2
        %vm543 = vcmp.lt.s32.totalorder %v522, 3
        %vm544 = vcmp.lt.s32.totalorder %v522, 4
        %v545 = vsel %vm541, %v525, %v528
        %v546 = vsel %vm544, %v534, 2102212464
        %v547 = vsel %vm543, %v531, %v546
        %v548 = vsel %vm542, %v545, %v547
        %v549 = vsel %vm541, %v528, %v531
        %v550 = vsel %vm544, %v537, 920167782
        %v551 = vsel %vm543, %v534, %v550
        %v552 = vsel %vm542, %v549, %v551
        %v553 = vsel %vm541, %v531, %v534
        %v554 = vsel %vm544, %v540, 1326507024
        %v555 = vsel %vm543, %v537, %v554
        %v556 = vsel %vm542, %v553, %v555
        %v557 = vshll.u32 %v517, 8
        %v558 = vand.u32 %v557, 65535
        %v559 = vshrl.u32 %v557, 16
        %v560 = vand.u32 %v556, 65535
        %v561 = vshrl.u32 %v556, 16
        %v562 = vmul.u32 %v558, %v560
        %v563 = vmul.u32 %v558, %v561
        %v564 = vmul.u32 %v559, %v560
        %v565 = vmul.u32 %v559, %v561
        %v566 = vshll.u32 %v563, 16
        %v567 = vshrl.u32 %v563, 16
        %v568 = vshll.u32 %v564, 16
        %v569 = vshrl.u32 %v564, 16
        %vm570 = vc.u32 %v562, %v566
        %v571 = vsel %vm570, 1, 0
        %v572 = vadd.s32 %v562, %v566
        %v573 = vadd.s32 %v565, %v571
        %vm574 = vc.u32 %v572, %v568
        %v575 = vsel %vm574, 1, 0
        %v576 = vadd.s32 %v572, %v568
        %v577 = vadd.s32 %v573, %v575
        %v578 = vadd.s32 %v577, %v567
        %v579 = vadd.s32 %v578, %v569
        %v580 = vand.u32 %v557, 65535
        %v581 = vshrl.u32 %v557, 16
        %v582 = vand.u32 %v552, 65535
        %v583 = vshrl.u32 %v552, 16
        %v584 = vmul.u32 %v580, %v582
        %v585 = vmul.u32 %v580, %v583
        %v586 = vmul.u32 %v581, %v582
        %v587 = vmul.u32 %v581, %v583
        %v588 = vshll.u32 %v585, 16
        %v589 = vshrl.u32 %v585, 16
        %v590 = vshll.u32 %v586, 16
        %v591 = vshrl.u32 %v586, 16
        %vm592 = vc.u32 %v584, %v588
        %v593 = vsel %vm592, 1, 0
        %v594 = vadd.s32 %v584, %v588
        %v595 = vadd.s32 %v587, %v593
        %vm596 = vc.u32 %v594, %v590
        %v597 = vsel %vm596, 1, 0
        %v598 = vadd.s32 %v594, %v590
        %v599 = vadd.s32 %v595, %v597
        %v600 = vadd.s32 %v599, %v589
        %v601 = vadd.s32 %v600, %v591
        %v602 = vmul.u32 %v557, %v548
        %v603 = vadd.s32 %v579, %v598
        %vm604 = vc.u32 %v579, %v598
        %v605 = vadd.s32 %v601, 1
        %v606 = vsel %vm604, %v605, %v601
        %v607 = vadd.s32 %v602, %v606
        %v608 = vadd.s32 %v607, 536870912
        %v609 = vshrl.u32 %v608, 30
        %v610 = vshll.u32 %v609, 30
        %v611 = vsub.s32 %v607, %v610
        %vm612 = vcmp.lt.s32.totalorder %v611, 0
        %v613 = vsub.s32 0, %v611
        %v614 = vsel %vm612, %v613, %v611
        %v615 = vclz %v614
        %v616 = vsub.s32 %v615, 2
        %vm617 = vcmp.gt.s32.totalorder 0, %v616
        %v618 = vsel %vm617, 0, %v616
        %v619 = vsub.s32 32, %v618
        %v620 = vshll.u32 %v611, %v618
        %v621 = vshrl.u32 %v603, %v619
        %v622 = vor.u32 %v620, %v621
        %v623 = vsub.s32 4294967266, %v618
        %v624 = vadd.s32 %v623, 127
        %v625 = vshll.u32 %v624, 23
        %v626 = vor.u32 4788187, %v625
        %v627 = vand.u32 2147483647, %v626
        %v629 = vcvt.s32.f32 %v622
        %v630 = vmul.f32 %v629, %v627
        %v631 = vxor.u32 %v630, 2147483648
        %v632 = vsel %vm511, %v631, %v630
        %v633 = vsub.s32 4, %v609
        %v634 = vsel %vm511, %v633, %v609
        %v635 = vsel %vm510, %v497, %v632
        %v636 = vsel %vm510, 0, %v634
        %v637 = vmul.f32 %v635, %v635
        %v638 = vmul.f32 %v637, -0.001358992
        %v639 = vadd.f32 %v638, 0.041655596
        %v640 = vmul.f32 %v637, %v639
        %v641 = vadd.f32 %v640, -0.4999988
        %v642 = vmul.f32 %v637, %v641
        %v643 = vadd.f32 1.0, %v642
        %v644 = vmul.f32 %v635, %v635
        %v645 = vmul.f32 %v644, -0.00019511016
        %v646 = vadd.f32 %v645, 0.008332121
        %v647 = vmul.f32 %v644, %v646
        %v648 = vadd.f32 %v647, -0.16666654
        %v649 = vmul.f32 %v644, %v648
        %v650 = vadd.f32 %v649, 1.0
        %v651 = vmul.f32 %v650, %v635
        %vm652 = vweird.f32 %v497
        %v653 = vadd.s32 %v636, 3
        %v654 = vand.u32 %v653, 3
        %vm655 = vcmp.lt.s32.totalorder %v654, 2
        %vm656 = vcmp.eq.s32.totalorder %v654, 0
        %v657 = vxor.u32 %v651, 2147483648
        %v658 = vsel %vm656, %v643, %v657
        %vm659 = vcmp.eq.s32.totalorder %v654, 2
        %v660 = vxor.u32 %v643, 2147483648
        %v661 = vsel %vm659, %v660, %v651
        %v662 = vsel %vm655, %v658, %v661
        %v663 = vsel %vm652, nan, %v662
        %v664 = vand.u32 2147483647, %v498
        %vm665 = vcmp.le.f32.partialorder %v664, 0.7853982
        %vm666 = vcmp.lt.s32.totalorder %v498, 0
        %v667 = vand.u32 %v498, 2139095040
        %v668 = vshrl.u32 %v667, 23
        %v669 = vsub.s32 %v668, 127
        %v670 = vand.u32 2147483647, %v498
        %v671 = vand.u32 %v670, 8388607
        %v672 = vor.u32 %v671, 8388608
        %v673 = vsub.s32 0, %v672
        %v674 = vadd.s32 %v669, 1
        %vm675 = vcmp.gt.s32.totalorder %v674, 0
        %v676 = vsel %vm675, %v674, 0
        %v677 = vshrl.u32 %v676, 5
        %v678 = vand.u32 %v676, 31
        %v679 = vsub.s32 32, %v678
        %v680 = vshrl.u32 683565275, %v679
        %v681 = vshll.u32 683565275, %v678
        %v682 = vshrl.u32 2475754826, %v679
        %v683 = vor.u32 %v681, %v682
        %v684 = vshll.u32 2475754826, %v678
        %v685 = vshrl.u32 2131351028, %v679
        %v686 = vor.u32 %v684, %v685
        %v687 = vshll.u32 2131351028, %v678
        %v688 = vshrl.u32 2102212464, %v679
        %v689 = vor.u32 %v687, %v688
        %v690 = vshll.u32 2102212464, %v678
        %v691 = vshrl.u32 920167782, %v679
        %v692 = vor.u32 %v690, %v691
        %v693 = vshll.u32 920167782, %v678
        %v694 = vshrl.u32 1326507024, %v679
        %v695 = vor.u32 %v693, %v694
        %vm696 = vcmp.lt.s32.totalorder %v677, 1
        %vm697 = vcmp.lt.s32.totalorder %v677, 2
        %vm698 = vcmp.lt.s32.totalorder %v677, 3
        %vm699 = vcmp.lt.s32.totalorder %v677, 4
        %v700 = vsel %vm696, %v680, %v683
        %v701 = vsel %vm699, %v689, 2102212464
        %v702 = vsel %vm698, %v686, %v701
        %v703 = vsel %vm697, %v700, %v702
        %v704 = vsel %vm696, %v683, %v686
        %v705 = vsel %vm699, %v692, 920167782
        %v706 = vsel %vm698, %v689, %v705
        %v707 = vsel %vm697, %v704, %v706
        %v708 = vsel %vm696, %v686, %v689
        %v709 = vsel %vm699, %v695, 1326507024
        %v710 = vsel %vm698, %v692, %v709
        %v711 = vsel %vm697, %v708, %v710
        %v712 = vshll.u32 %v672, 8
        %v713 = vand.u32 %v712, 65535
        %v714 = vshrl.u32 %v712, 16
        %v715 = vand.u32 %v711, 65535
        %v716 = vshrl.u32 %v711, 16
        %v717 = vmul.u32 %v713, %v715
        %v718 = vmul.u32 %v713, %v716
        %v719 = vmul.u32 %v714, %v715
        %v720 = vmul.u32 %v714, %v716
        %v721 = vshll.u32 %v718, 16
        %v722 = vshrl.u32 %v718, 16
        %v723 = vshll.u32 %v719, 16
        %v724 = vshrl.u32 %v719, 16
        %vm725 = vc.u32 %v717, %v721
        %v726 = vsel %vm725, 1, 0
        %v727 = vadd.s32 %v717, %v721
        %v728 = vadd.s32 %v720, %v726
        %vm729 = vc.u32 %v727, %v723
        %v730 = vsel %vm729, 1, 0
        %v731 = vadd.s32 %v727, %v723
        %v732 = vadd.s32 %v728, %v730
        %v733 = vadd.s32 %v732, %v722
        %v734 = vadd.s32 %v733, %v724
        %v735 = vand.u32 %v712, 65535
        %v736 = vshrl.u32 %v712, 16
        %v737 = vand.u32 %v707, 65535
        %v738 = vshrl.u32 %v707, 16
        %v739 = vmul.u32 %v735, %v737
        %v740 = vmul.u32 %v735, %v738
        %v741 = vmul.u32 %v736, %v737
        %v742 = vmul.u32 %v736, %v738
        %v743 = vshll.u32 %v740, 16
        %v744 = vshrl.u32 %v740, 16
        %v745 = vshll.u32 %v741, 16
        %v746 = vshrl.u32 %v741, 16
        %vm747 = vc.u32 %v739, %v743
        %v748 = vsel %vm747, 1, 0
        %v749 = vadd.s32 %v739, %v743
        %v750 = vadd.s32 %v742, %v748
        %vm751 = vc.u32 %v749, %v745
        %v752 = vsel %vm751, 1, 0
        %v753 = vadd.s32 %v749, %v745
        %v754 = vadd.s32 %v750, %v752
        %v755 = vadd.s32 %v754, %v744
        %v756 = vadd.s32 %v755, %v746
        %v757 = vmul.u32 %v712, %v703
        %v758 = vadd.s32 %v734, %v753
        %vm759 = vc.u32 %v734, %v753
        %v760 = vadd.s32 %v756, 1
        %v761 = vsel %vm759, %v760, %v756
        %v762 = vadd.s32 %v757, %v761
        %v763 = vadd.s32 %v762, 536870912
        %v764 = vshrl.u32 %v763, 30
        %v765 = vshll.u32 %v764, 30
        %v766 = vsub.s32 %v762, %v765
        %vm767 = vcmp.lt.s32.totalorder %v766, 0
        %v768 = vsub.s32 0, %v766
        %v769 = vsel %vm767, %v768, %v766
        %v770 = vclz %v769
        %v771 = vsub.s32 %v770, 2
        %vm772 = vcmp.gt.s32.totalorder 0, %v771
        %v773 = vsel %vm772, 0, %v771
        %v774 = vsub.s32 32, %v773
        %v775 = vshll.u32 %v766, %v773
        %v776 = vshrl.u32 %v758, %v774
        %v777 = vor.u32 %v775, %v776
        %v778 = vsub.s32 4294967266, %v773
        %v779 = vadd.s32 %v778, 127
        %v780 = vshll.u32 %v779, 23
        %v781 = vor.u32 4788187, %v780
        %v782 = vand.u32 2147483647, %v781
        %v784 = vcvt.s32.f32 %v777
        %v785 = vmul.f32 %v784, %v782
        %v786 = vxor.u32 %v785, 2147483648
        %v787 = vsel %vm666, %v786, %v785
        %v788 = vsub.s32 4, %v764
        %v789 = vsel %vm666, %v788, %v764
        %v790 = vsel %vm665, %v498, %v787
        %v791 = vsel %vm665, 0, %v789
        %v792 = vmul.f32 %v790, %v790
        %v793 = vmul.f32 %v792, -0.001358992
        %v794 = vadd.f32 %v793, 0.041655596
        %v795 = vmul.f32 %v792, %v794
        %v796 = vadd.f32 %v795, -0.4999988
        %v797 = vmul.f32 %v792, %v796
        %v798 = vadd.f32 1.0, %v797
        %v799 = vmul.f32 %v790, %v790
        %v800 = vmul.f32 %v799, -0.00019511016
        %v801 = vadd.f32 %v800, 0.008332121
        %v802 = vmul.f32 %v799, %v801
        %v803 = vadd.f32 %v802, -0.16666654
        %v804 = vmul.f32 %v799, %v803
        %v805 = vadd.f32 %v804, 1.0
        %v806 = vmul.f32 %v805, %v790
        %vm807 = vweird.f32 %v498
        %v808 = vadd.s32 %v791, 3
        %v809 = vand.u32 %v808, 3
        %vm810 = vcmp.lt.s32.totalorder %v809, 2
        %vm811 = vcmp.eq.s32.totalorder %v809, 0
        %v812 = vxor.u32 %v806, 2147483648
        %v813 = vsel %vm811, %v798, %v812
        %vm814 = vcmp.eq.s32.totalorder %v809, 2
        %v815 = vxor.u32 %v798, 2147483648
        %v816 = vsel %vm814, %v815, %v806
        %v817 = vsel %vm810, %v813, %v816
        %v818 = vsel %vm807, nan, %v817
        %v819 = vand.u32 2147483647, %v499
        %vm820 = vcmp.le.f32.partialorder %v819, 0.7853982
        %vm821 = vcmp.lt.s32.totalorder %v499, 0
        %v822 = vand.u32 %v499, 2139095040
        %v823 = vshrl.u32 %v822, 23
        %v824 = vsub.s32 %v823, 127
        %v825 = vand.u32 2147483647, %v499
        %v826 = vand.u32 %v825, 8388607
        %v827 = vor.u32 %v826, 8388608
        %v828 = vsub.s32 0, %v827
        %v829 = vadd.s32 %v824, 1
        %vm830 = vcmp.gt.s32.totalorder %v829, 0
        %v831 = vsel %vm830, %v829, 0
        %v832 = vshrl.u32 %v831, 5
        %v833 = vand.u32 %v831, 31
        %v834 = vsub.s32 32, %v833
        %v835 = vshrl.u32 683565275, %v834
        %v836 = vshll.u32 683565275, %v833
        %v837 = vshrl.u32 2475754826, %v834
        %v838 = vor.u32 %v836, %v837
        %v839 = vshll.u32 2475754826, %v833
        %v840 = vshrl.u32 2131351028, %v834
        %v841 = vor.u32 %v839, %v840
        %v842 = vshll.u32 2131351028, %v833
        %v843 = vshrl.u32 2102212464, %v834
        %v844 = vor.u32 %v842, %v843
        %v845 = vshll.u32 2102212464, %v833
        %v846 = vshrl.u32 920167782, %v834
        %v847 = vor.u32 %v845, %v846
        %v848 = vshll.u32 920167782, %v833
        %v849 = vshrl.u32 1326507024, %v834
        %v850 = vor.u32 %v848, %v849
        %vm851 = vcmp.lt.s32.totalorder %v832, 1
        %vm852 = vcmp.lt.s32.totalorder %v832, 2
        %vm853 = vcmp.lt.s32.totalorder %v832, 3
        %vm854 = vcmp.lt.s32.totalorder %v832, 4
        %v855 = vsel %vm851, %v835, %v838
        %v856 = vsel %vm854, %v844, 2102212464
        %v857 = vsel %vm853, %v841, %v856
        %v858 = vsel %vm852, %v855, %v857
        %v859 = vsel %vm851, %v838, %v841
        %v860 = vsel %vm854, %v847, 920167782
        %v861 = vsel %vm853, %v844, %v860
        %v862 = vsel %vm852, %v859, %v861
        %v863 = vsel %vm851, %v841, %v844
        %v864 = vsel %vm854, %v850, 1326507024
        %v865 = vsel %vm853, %v847, %v864
        %v866 = vsel %vm852, %v863, %v865
        %v867 = vshll.u32 %v827, 8
        %v868 = vand.u32 %v867, 65535
        %v869 = vshrl.u32 %v867, 16
        %v870 = vand.u32 %v866, 65535
        %v871 = vshrl.u32 %v866, 16
        %v872 = vmul.u32 %v868, %v870
        %v873 = vmul.u32 %v868, %v871
        %v874 = vmul.u32 %v869, %v870
        %v875 = vmul.u32 %v869, %v871
        %v876 = vshll.u32 %v873, 16
        %v877 = vshrl.u32 %v873, 16
        %v878 = vshll.u32 %v874, 16
        %v879 = vshrl.u32 %v874, 16
        %vm880 = vc.u32 %v872, %v876
        %v881 = vsel %vm880, 1, 0
        %v882 = vadd.s32 %v872, %v876
        %v883 = vadd.s32 %v875, %v881
        %vm884 = vc.u32 %v882, %v878
        %v885 = vsel %vm884, 1, 0
        %v886 = vadd.s32 %v882, %v878
        %v887 = vadd.s32 %v883, %v885
        %v888 = vadd.s32 %v887, %v877
        %v889 = vadd.s32 %v888, %v879
        %v890 = vand.u32 %v867, 65535
        %v891 = vshrl.u32 %v867, 16
        %v892 = vand.u32 %v862, 65535
        %v893 = vshrl.u32 %v862, 16
        %v894 = vmul.u32 %v890, %v892
        %v895 = vmul.u32 %v890, %v893
        %v896 = vmul.u32 %v891, %v892
        %v897 = vmul.u32 %v891, %v893
        %v898 = vshll.u32 %v895, 16
        %v899 = vshrl.u32 %v895, 16
        %v900 = vshll.u32 %v896, 16
        %v901 = vshrl.u32 %v896, 16
        %vm902 = vc.u32 %v894, %v898
        %v903 = vsel %vm902, 1, 0
        %v904 = vadd.s32 %v894, %v898
        %v905 = vadd.s32 %v897, %v903
        %vm906 = vc.u32 %v904, %v900
        %v907 = vsel %vm906, 1, 0
        %v908 = vadd.s32 %v904, %v900
        %v909 = vadd.s32 %v905, %v907
        %v910 = vadd.s32 %v909, %v899
        %v911 = vadd.s32 %v910, %v901
        %v912 = vmul.u32 %v867, %v858
        %v913 = vadd.s32 %v889, %v908
        %vm914 = vc.u32 %v889, %v908
        %v915 = vadd.s32 %v911, 1
        %v916 = vsel %vm914, %v915, %v911
        %v917 = vadd.s32 %v912, %v916
        %v918 = vadd.s32 %v917, 536870912
        %v919 = vshrl.u32 %v918, 30
        %v920 = vshll.u32 %v919, 30
        %v921 = vsub.s32 %v917, %v920
        %vm922 = vcmp.lt.s32.totalorder %v921, 0
        %v923 = vsub.s32 0, %v921
        %v924 = vsel %vm922, %v923, %v921
        %v925 = vclz %v924
        %v926 = vsub.s32 %v925, 2
        %vm927 = vcmp.gt.s32.totalorder 0, %v926
        %v928 = vsel %vm927, 0, %v926
        %v929 = vsub.s32 32, %v928
        %v930 = vshll.u32 %v921, %v928
        %v931 = vshrl.u32 %v913, %v929
        %v932 = vor.u32 %v930, %v931
        %v933 = vsub.s32 4294967266, %v928
        %v934 = vadd.s32 %v933, 127
        %v935 = vshll.u32 %v934, 23
        %v936 = vor.u32 4788187, %v935
        %v937 = vand.u32 2147483647, %v936
        %v939 = vcvt.s32.f32 %v932
        %v940 = vmul.f32 %v939, %v937
        %v941 = vxor.u32 %v940, 2147483648
        %v942 = vsel %vm821, %v941, %v940
        %v943 = vsub.s32 4, %v919
        %v944 = vsel %vm821, %v943, %v919
        %v945 = vsel %vm820, %v499, %v942
        %v946 = vsel %vm820, 0, %v944
        %v947 = vmul.f32 %v945, %v945
        %v948 = vmul.f32 %v947, -0.001358992
        %v949 = vadd.f32 %v948, 0.041655596
        %v950 = vmul.f32 %v947, %v949
        %v951 = vadd.f32 %v950, -0.4999988
        %v952 = vmul.f32 %v947, %v951
        %v953 = vadd.f32 1.0, %v952
        %v954 = vmul.f32 %v945, %v945
        %v955 = vmul.f32 %v954, -0.00019511016
        %v956 = vadd.f32 %v955, 0.008332121
        %v957 = vmul.f32 %v954, %v956
        %v958 = vadd.f32 %v957, -0.16666654
        %v959 = vmul.f32 %v954, %v958
        %v960 = vadd.f32 %v959, 1.0
        %v961 = vmul.f32 %v960, %v945
        %vm962 = vweird.f32 %v499
        %v963 = vadd.s32 %v946, 3
        %v964 = vand.u32 %v963, 3
        %vm965 = vcmp.lt.s32.totalorder %v964, 2
        %vm966 = vcmp.eq.s32.totalorder %v964, 0
        %v967 = vxor.u32 %v961, 2147483648
        %v968 = vsel %vm966, %v953, %v967
        %vm969 = vcmp.eq.s32.totalorder %v964, 2
        %v970 = vxor.u32 %v953, 2147483648
        %v971 = vsel %vm969, %v970, %v961
        %v972 = vsel %vm965, %v968, %v971
        %v973 = vsel %vm962, nan, %v972
        %v974 = vand.u32 2147483647, %v500
        %vm975 = vcmp.le.f32.partialorder %v974, 0.7853982
        %vm976 = vcmp.lt.s32.totalorder %v500, 0
        %v977 = vand.u32 %v500, 2139095040
        %v978 = vshrl.u32 %v977, 23
        %v979 = vsub.s32 %v978, 127
        %v980 = vand.u32 2147483647, %v500
        %v981 = vand.u32 %v980, 8388607
        %v982 = vor.u32 %v981, 8388608
        %v983 = vsub.s32 0, %v982
        %v984 = vadd.s32 %v979, 1
        %vm985 = vcmp.gt.s32.totalorder %v984, 0
        %v986 = vsel %vm985, %v984, 0
        %v987 = vshrl.u32 %v986, 5
        %v988 = vand.u32 %v986, 31
        %v989 = vsub.s32 32, %v988
        %v990 = vshrl.u32 683565275, %v989
        %v991 = vshll.u32 683565275, %v988
        %v992 = vshrl.u32 2475754826, %v989
        %v993 = vor.u32 %v991, %v992
        %v994 = vshll.u32 2475754826, %v988
        %v995 = vshrl.u32 2131351028, %v989
        %v996 = vor.u32 %v994, %v995
        %v997 = vshll.u32 2131351028, %v988
        %v998 = vshrl.u32 2102212464, %v989
        %v999 = vor.u32 %v997, %v998
        %v1000 = vshll.u32 2102212464, %v988
        %v1001 = vshrl.u32 920167782, %v989
        %v1002 = vor.u32 %v1000, %v1001
        %v1003 = vshll.u32 920167782, %v988
        %v1004 = vshrl.u32 1326507024, %v989
        %v1005 = vor.u32 %v1003, %v1004
        %vm1006 = vcmp.lt.s32.totalorder %v987, 1
        %vm1007 = vcmp.lt.s32.totalorder %v987, 2
        %vm1008 = vcmp.lt.s32.totalorder %v987, 3
        %vm1009 = vcmp.lt.s32.totalorder %v987, 4
        %v1010 = vsel %vm1006, %v990, %v993
        %v1011 = vsel %vm1009, %v999, 2102212464
        %v1012 = vsel %vm1008, %v996, %v1011
        %v1013 = vsel %vm1007, %v1010, %v1012
        %v1014 = vsel %vm1006, %v993, %v996
        %v1015 = vsel %vm1009, %v1002, 920167782
        %v1016 = vsel %vm1008, %v999, %v1015
        %v1017 = vsel %vm1007, %v1014, %v1016
        %v1018 = vsel %vm1006, %v996, %v999
        %v1019 = vsel %vm1009, %v1005, 1326507024
        %v1020 = vsel %vm1008, %v1002, %v1019
        %v1021 = vsel %vm1007, %v1018, %v1020
        %v1022 = vshll.u32 %v982, 8
        %v1023 = vand.u32 %v1022, 65535
        %v1024 = vshrl.u32 %v1022, 16
        %v1025 = vand.u32 %v1021, 65535
        %v1026 = vshrl.u32 %v1021, 16
        %v1027 = vmul.u32 %v1023, %v1025
        %v1028 = vmul.u32 %v1023, %v1026
        %v1029 = vmul.u32 %v1024, %v1025
        %v1030 = vmul.u32 %v1024, %v1026
        %v1031 = vshll.u32 %v1028, 16
        %v1032 = vshrl.u32 %v1028, 16
        %v1033 = vshll.u32 %v1029, 16
        %v1034 = vshrl.u32 %v1029, 16
        %vm1035 = vc.u32 %v1027, %v1031
        %v1036 = vsel %vm1035, 1, 0
        %v1037 = vadd.s32 %v1027, %v1031
        %v1038 = vadd.s32 %v1030, %v1036
        %vm1039 = vc.u32 %v1037, %v1033
        %v1040 = vsel %vm1039, 1, 0
        %v1041 = vadd.s32 %v1037, %v1033
        %v1042 = vadd.s32 %v1038, %v1040
        %v1043 = vadd.s32 %v1042, %v1032
        %v1044 = vadd.s32 %v1043, %v1034
        %v1045 = vand.u32 %v1022, 65535
        %v1046 = vshrl.u32 %v1022, 16
        %v1047 = vand.u32 %v1017, 65535
        %v1048 = vshrl.u32 %v1017, 16
        %v1049 = vmul.u32 %v1045, %v1047
        %v1050 = vmul.u32 %v1045, %v1048
        %v1051 = vmul.u32 %v1046, %v1047
        %v1052 = vmul.u32 %v1046, %v1048
        %v1053 = vshll.u32 %v1050, 16
        %v1054 = vshrl.u32 %v1050, 16
        %v1055 = vshll.u32 %v1051, 16
        %v1056 = vshrl.u32 %v1051, 16
        %vm1057 = vc.u32 %v1049, %v1053
        %v1058 = vsel %vm1057, 1, 0
        %v1059 = vadd.s32 %v1049, %v1053
        %v1060 = vadd.s32 %v1052, %v1058
        %vm1061 = vc.u32 %v1059, %v1055
        %v1062 = vsel %vm1061, 1, 0
        %v1063 = vadd.s32 %v1059, %v1055
        %v1064 = vadd.s32 %v1060, %v1062
        %v1065 = vadd.s32 %v1064, %v1054
        %v1066 = vadd.s32 %v1065, %v1056
        %v1067 = vmul.u32 %v1022, %v1013
        %v1068 = vadd.s32 %v1044, %v1063
        %vm1069 = vc.u32 %v1044, %v1063
        %v1070 = vadd.s32 %v1066, 1
        %v1071 = vsel %vm1069, %v1070, %v1066
        %v1072 = vadd.s32 %v1067, %v1071
        %v1073 = vadd.s32 %v1072, 536870912
        %v1074 = vshrl.u32 %v1073, 30
        %v1075 = vshll.u32 %v1074, 30
        %v1076 = vsub.s32 %v1072, %v1075
        %vm1077 = vcmp.lt.s32.totalorder %v1076, 0
        %v1078 = vsub.s32 0, %v1076
        %v1079 = vsel %vm1077, %v1078, %v1076
        %v1080 = vclz %v1079
        %v1081 = vsub.s32 %v1080, 2
        %vm1082 = vcmp.gt.s32.totalorder 0, %v1081
        %v1083 = vsel %vm1082, 0, %v1081
        %v1084 = vsub.s32 32, %v1083
        %v1085 = vshll.u32 %v1076, %v1083
        %v1086 = vshrl.u32 %v1068, %v1084
        %v1087 = vor.u32 %v1085, %v1086
        %v1088 = vsub.s32 4294967266, %v1083
        %v1089 = vadd.s32 %v1088, 127
        %v1090 = vshll.u32 %v1089, 23
        %v1091 = vor.u32 4788187, %v1090
        %v1092 = vand.u32 2147483647, %v1091
        %v1094 = vcvt.s32.f32 %v1087
        %v1095 = vmul.f32 %v1094, %v1092
        %v1096 = vxor.u32 %v1095, 2147483648
        %v1097 = vsel %vm976, %v1096, %v1095
        %v1098 = vsub.s32 4, %v1074
        %v1099 = vsel %vm976, %v1098, %v1074
        %v1100 = vsel %vm975, %v500, %v1097
        %v1101 = vsel %vm975, 0, %v1099
        %v1102 = vmul.f32 %v1100, %v1100
        %v1103 = vmul.f32 %v1102, -0.001358992
        %v1104 = vadd.f32 %v1103, 0.041655596
        %v1105 = vmul.f32 %v1102, %v1104
        %v1106 = vadd.f32 %v1105, -0.4999988
        %v1107 = vmul.f32 %v1102, %v1106
        %v1108 = vadd.f32 1.0, %v1107
        %v1109 = vmul.f32 %v1100, %v1100
        %v1110 = vmul.f32 %v1109, -0.00019511016
        %v1111 = vadd.f32 %v1110, 0.008332121
        %v1112 = vmul.f32 %v1109, %v1111
        %v1113 = vadd.f32 %v1112, -0.16666654
        %v1114 = vmul.f32 %v1109, %v1113
        %v1115 = vadd.f32 %v1114, 1.0
        %v1116 = vmul.f32 %v1115, %v1100
        %vm1117 = vweird.f32 %v500
        %v1118 = vadd.s32 %v1101, 3
        %v1119 = vand.u32 %v1118, 3
        %vm1120 = vcmp.lt.s32.totalorder %v1119, 2
        %vm1121 = vcmp.eq.s32.totalorder %v1119, 0
        %v1122 = vxor.u32 %v1116, 2147483648
        %v1123 = vsel %vm1121, %v1108, %v1122
        %vm1124 = vcmp.eq.s32.totalorder %v1119, 2
        %v1125 = vxor.u32 %v1108, 2147483648
        %v1126 = vsel %vm1124, %v1125, %v1116
        %v1127 = vsel %vm1120, %v1123, %v1126
        %v1128 = vsel %vm1117, nan, %v1127
        %v1129 = vand.u32 2147483647, %v501
        %vm1130 = vcmp.le.f32.partialorder %v1129, 0.7853982
        %vm1131 = vcmp.lt.s32.totalorder %v501, 0
        %v1132 = vand.u32 %v501, 2139095040
        %v1133 = vshrl.u32 %v1132, 23
        %v1134 = vsub.s32 %v1133, 127
        %v1135 = vand.u32 2147483647, %v501
        %v1136 = vand.u32 %v1135, 8388607
        %v1137 = vor.u32 %v1136, 8388608
        %v1138 = vsub.s32 0, %v1137
        %v1139 = vadd.s32 %v1134, 1
        %vm1140 = vcmp.gt.s32.totalorder %v1139, 0
        %v1141 = vsel %vm1140, %v1139, 0
        %v1142 = vshrl.u32 %v1141, 5
        %v1143 = vand.u32 %v1141, 31
        %v1144 = vsub.s32 32, %v1143
        %v1145 = vshrl.u32 683565275, %v1144
        %v1146 = vshll.u32 683565275, %v1143
        %v1147 = vshrl.u32 2475754826, %v1144
        %v1148 = vor.u32 %v1146, %v1147
        %v1149 = vshll.u32 2475754826, %v1143
        %v1150 = vshrl.u32 2131351028, %v1144
        %v1151 = vor.u32 %v1149, %v1150
        %v1152 = vshll.u32 2131351028, %v1143
        %v1153 = vshrl.u32 2102212464, %v1144
        %v1154 = vor.u32 %v1152, %v1153
        %v1155 = vshll.u32 2102212464, %v1143
        %v1156 = vshrl.u32 920167782, %v1144
        %v1157 = vor.u32 %v1155, %v1156
        %v1158 = vshll.u32 920167782, %v1143
        %v1159 = vshrl.u32 1326507024, %v1144
        %v1160 = vor.u32 %v1158, %v1159
        %vm1161 = vcmp.lt.s32.totalorder %v1142, 1
        %vm1162 = vcmp.lt.s32.totalorder %v1142, 2
        %vm1163 = vcmp.lt.s32.totalorder %v1142, 3
        %vm1164 = vcmp.lt.s32.totalorder %v1142, 4
        %v1165 = vsel %vm1161, %v1145, %v1148
        %v1166 = vsel %vm1164, %v1154, 2102212464
        %v1167 = vsel %vm1163, %v1151, %v1166
        %v1168 = vsel %vm1162, %v1165, %v1167
        %v1169 = vsel %vm1161, %v1148, %v1151
        %v1170 = vsel %vm1164, %v1157, 920167782
        %v1171 = vsel %vm1163, %v1154, %v1170
        %v1172 = vsel %vm1162, %v1169, %v1171
        %v1173 = vsel %vm1161, %v1151, %v1154
        %v1174 = vsel %vm1164, %v1160, 1326507024
        %v1175 = vsel %vm1163, %v1157, %v1174
        %v1176 = vsel %vm1162, %v1173, %v1175
        %v1177 = vshll.u32 %v1137, 8
        %v1178 = vand.u32 %v1177, 65535
        %v1179 = vshrl.u32 %v1177, 16
        %v1180 = vand.u32 %v1176, 65535
        %v1181 = vshrl.u32 %v1176, 16
        %v1182 = vmul.u32 %v1178, %v1180
        %v1183 = vmul.u32 %v1178, %v1181
        %v1184 = vmul.u32 %v1179, %v1180
        %v1185 = vmul.u32 %v1179, %v1181
        %v1186 = vshll.u32 %v1183, 16
        %v1187 = vshrl.u32 %v1183, 16
        %v1188 = vshll.u32 %v1184, 16
        %v1189 = vshrl.u32 %v1184, 16
        %vm1190 = vc.u32 %v1182, %v1186
        %v1191 = vsel %vm1190, 1, 0
        %v1192 = vadd.s32 %v1182, %v1186
        %v1193 = vadd.s32 %v1185, %v1191
        %vm1194 = vc.u32 %v1192, %v1188
        %v1195 = vsel %vm1194, 1, 0
        %v1196 = vadd.s32 %v1192, %v1188
        %v1197 = vadd.s32 %v1193, %v1195
        %v1198 = vadd.s32 %v1197, %v1187
        %v1199 = vadd.s32 %v1198, %v1189
        %v1200 = vand.u32 %v1177, 65535
        %v1201 = vshrl.u32 %v1177, 16
        %v1202 = vand.u32 %v1172, 65535
        %v1203 = vshrl.u32 %v1172, 16
        %v1204 = vmul.u32 %v1200, %v1202
        %v1205 = vmul.u32 %v1200, %v1203
        %v1206 = vmul.u32 %v1201, %v1202
        %v1207 = vmul.u32 %v1201, %v1203
        %v1208 = vshll.u32 %v1205, 16
        %v1209 = vshrl.u32 %v1205, 16
        %v1210 = vshll.u32 %v1206, 16
        %v1211 = vshrl.u32 %v1206, 16
        %vm1212 = vc.u32 %v1204, %v1208
        %v1213 = vsel %vm1212, 1, 0
        %v1214 = vadd.s32 %v1204, %v1208
        %v1215 = vadd.s32 %v1207, %v1213
        %vm1216 = vc.u32 %v1214, %v1210
        %v1217 = vsel %vm1216, 1, 0
        %v1218 = vadd.s32 %v1214, %v1210
        %v1219 = vadd.s32 %v1215, %v1217
        %v1220 = vadd.s32 %v1219, %v1209
        %v1221 = vadd.s32 %v1220, %v1211
        %v1222 = vmul.u32 %v1177, %v1168
        %v1223 = vadd.s32 %v1199, %v1218
        %vm1224 = vc.u32 %v1199, %v1218
        %v1225 = vadd.s32 %v1221, 1
        %v1226 = vsel %vm1224, %v1225, %v1221
        %v1227 = vadd.s32 %v1222, %v1226
        %v1228 = vadd.s32 %v1227, 536870912
        %v1229 = vshrl.u32 %v1228, 30
        %v1230 = vshll.u32 %v1229, 30
        %v1231 = vsub.s32 %v1227, %v1230
        %vm1232 = vcmp.lt.s32.totalorder %v1231, 0
        %v1233 = vsub.s32 0, %v1231
        %v1234 = vsel %vm1232, %v1233, %v1231
        %v1235 = vclz %v1234
        %v1236 = vsub.s32 %v1235, 2
        %vm1237 = vcmp.gt.s32.totalorder 0, %v1236
        %v1238 = vsel %vm1237, 0, %v1236
        %v1239 = vsub.s32 32, %v1238
        %v1240 = vshll.u32 %v1231, %v1238
        %v1241 = vshrl.u32 %v1223, %v1239
        %v1242 = vor.u32 %v1240, %v1241
        %v1243 = vsub.s32 4294967266, %v1238
        %v1244 = vadd.s32 %v1243, 127
        %v1245 = vshll.u32 %v1244, 23
        %v1246 = vor.u32 4788187, %v1245
        %v1247 = vand.u32 2147483647, %v1246
        %v1249 = vcvt.s32.f32 %v1242
        %v1250 = vmul.f32 %v1249, %v1247
        %v1251 = vxor.u32 %v1250, 2147483648
        %v1252 = vsel %vm1131, %v1251, %v1250
        %v1253 = vsub.s32 4, %v1229
        %v1254 = vsel %vm1131, %v1253, %v1229
        %v1255 = vsel %vm1130, %v501, %v1252
        %v1256 = vsel %vm1130, 0, %v1254
        %v1257 = vmul.f32 %v1255, %v1255
        %v1258 = vmul.f32 %v1257, -0.001358992
        %v1259 = vadd.f32 %v1258, 0.041655596
        %v1260 = vmul.f32 %v1257, %v1259
        %v1261 = vadd.f32 %v1260, -0.4999988
        %v1262 = vmul.f32 %v1257, %v1261
        %v1263 = vadd.f32 1.0, %v1262
        %v1264 = vmul.f32 %v1255, %v1255
        %v1265 = vmul.f32 %v1264, -0.00019511016
        %v1266 = vadd.f32 %v1265, 0.008332121
        %v1267 = vmul.f32 %v1264, %v1266
        %v1268 = vadd.f32 %v1267, -0.16666654
        %v1269 = vmul.f32 %v1264, %v1268
        %v1270 = vadd.f32 %v1269, 1.0
        %v1271 = vmul.f32 %v1270, %v1255
        %vm1272 = vweird.f32 %v501
        %v1273 = vadd.s32 %v1256, 3
        %v1274 = vand.u32 %v1273, 3
        %vm1275 = vcmp.lt.s32.totalorder %v1274, 2
        %vm1276 = vcmp.eq.s32.totalorder %v1274, 0
        %v1277 = vxor.u32 %v1271, 2147483648
        %v1278 = vsel %vm1276, %v1263, %v1277
        %vm1279 = vcmp.eq.s32.totalorder %v1274, 2
        %v1280 = vxor.u32 %v1263, 2147483648
        %v1281 = vsel %vm1279, %v1280, %v1271
        %v1282 = vsel %vm1275, %v1278, %v1281
        %v1283 = vsel %vm1272, nan, %v1282
        %v1284 = vand.u32 2147483647, %v502
        %vm1285 = vcmp.le.f32.partialorder %v1284, 0.7853982
        %vm1286 = vcmp.lt.s32.totalorder %v502, 0
        %v1287 = vand.u32 %v502, 2139095040
        %v1288 = vshrl.u32 %v1287, 23
        %v1289 = vsub.s32 %v1288, 127
        %v1290 = vand.u32 2147483647, %v502
        %v1291 = vand.u32 %v1290, 8388607
        %v1292 = vor.u32 %v1291, 8388608
        %v1293 = vsub.s32 0, %v1292
        %v1294 = vadd.s32 %v1289, 1
        %vm1295 = vcmp.gt.s32.totalorder %v1294, 0
        %v1296 = vsel %vm1295, %v1294, 0
        %v1297 = vshrl.u32 %v1296, 5
        %v1298 = vand.u32 %v1296, 31
        %v1299 = vsub.s32 32, %v1298
        %v1300 = vshrl.u32 683565275, %v1299
        %v1301 = vshll.u32 683565275, %v1298
        %v1302 = vshrl.u32 2475754826, %v1299
        %v1303 = vor.u32 %v1301, %v1302
        %v1304 = vshll.u32 2475754826, %v1298
        %v1305 = vshrl.u32 2131351028, %v1299
        %v1306 = vor.u32 %v1304, %v1305
        %v1307 = vshll.u32 2131351028, %v1298
        %v1308 = vshrl.u32 2102212464, %v1299
        %v1309 = vor.u32 %v1307, %v1308
        %v1310 = vshll.u32 2102212464, %v1298
        %v1311 = vshrl.u32 920167782, %v1299
        %v1312 = vor.u32 %v1310, %v1311
        %v1313 = vshll.u32 920167782, %v1298
        %v1314 = vshrl.u32 1326507024, %v1299
        %v1315 = vor.u32 %v1313, %v1314
        %vm1316 = vcmp.lt.s32.totalorder %v1297, 1
        %vm1317 = vcmp.lt.s32.totalorder %v1297, 2
        %vm1318 = vcmp.lt.s32.totalorder %v1297, 3
        %vm1319 = vcmp.lt.s32.totalorder %v1297, 4
        %v1320 = vsel %vm1316, %v1300, %v1303
        %v1321 = vsel %vm1319, %v1309, 2102212464
        %v1322 = vsel %vm1318, %v1306, %v1321
        %v1323 = vsel %vm1317, %v1320, %v1322
        %v1324 = vsel %vm1316, %v1303, %v1306
        %v1325 = vsel %vm1319, %v1312, 920167782
        %v1326 = vsel %vm1318, %v1309, %v1325
        %v1327 = vsel %vm1317, %v1324, %v1326
        %v1328 = vsel %vm1316, %v1306, %v1309
        %v1329 = vsel %vm1319, %v1315, 1326507024
        %v1330 = vsel %vm1318, %v1312, %v1329
        %v1331 = vsel %vm1317, %v1328, %v1330
        %v1332 = vshll.u32 %v1292, 8
        %v1333 = vand.u32 %v1332, 65535
        %v1334 = vshrl.u32 %v1332, 16
        %v1335 = vand.u32 %v1331, 65535
        %v1336 = vshrl.u32 %v1331, 16
        %v1337 = vmul.u32 %v1333, %v1335
        %v1338 = vmul.u32 %v1333, %v1336
        %v1339 = vmul.u32 %v1334, %v1335
        %v1340 = vmul.u32 %v1334, %v1336
        %v1341 = vshll.u32 %v1338, 16
        %v1342 = vshrl.u32 %v1338, 16
        %v1343 = vshll.u32 %v1339, 16
        %v1344 = vshrl.u32 %v1339, 16
        %vm1345 = vc.u32 %v1337, %v1341
        %v1346 = vsel %vm1345, 1, 0
        %v1347 = vadd.s32 %v1337, %v1341
        %v1348 = vadd.s32 %v1340, %v1346
        %vm1349 = vc.u32 %v1347, %v1343
        %v1350 = vsel %vm1349, 1, 0
        %v1351 = vadd.s32 %v1347, %v1343
        %v1352 = vadd.s32 %v1348, %v1350
        %v1353 = vadd.s32 %v1352, %v1342
        %v1354 = vadd.s32 %v1353, %v1344
        %v1355 = vand.u32 %v1332, 65535
        %v1356 = vshrl.u32 %v1332, 16
        %v1357 = vand.u32 %v1327, 65535
        %v1358 = vshrl.u32 %v1327, 16
        %v1359 = vmul.u32 %v1355, %v1357
        %v1360 = vmul.u32 %v1355, %v1358
        %v1361 = vmul.u32 %v1356, %v1357
        %v1362 = vmul.u32 %v1356, %v1358
        %v1363 = vshll.u32 %v1360, 16
        %v1364 = vshrl.u32 %v1360, 16
        %v1365 = vshll.u32 %v1361, 16
        %v1366 = vshrl.u32 %v1361, 16
        %vm1367 = vc.u32 %v1359, %v1363
        %v1368 = vsel %vm1367, 1, 0
        %v1369 = vadd.s32 %v1359, %v1363
        %v1370 = vadd.s32 %v1362, %v1368
        %vm1371 = vc.u32 %v1369, %v1365
        %v1372 = vsel %vm1371, 1, 0
        %v1373 = vadd.s32 %v1369, %v1365
        %v1374 = vadd.s32 %v1370, %v1372
        %v1375 = vadd.s32 %v1374, %v1364
        %v1376 = vadd.s32 %v1375, %v1366
        %v1377 = vmul.u32 %v1332, %v1323
        %v1378 = vadd.s32 %v1354, %v1373
        %vm1379 = vc.u32 %v1354, %v1373
        %v1380 = vadd.s32 %v1376, 1
        %v1381 = vsel %vm1379, %v1380, %v1376
        %v1382 = vadd.s32 %v1377, %v1381
        %v1383 = vadd.s32 %v1382, 536870912
        %v1384 = vshrl.u32 %v1383, 30
        %v1385 = vshll.u32 %v1384, 30
        %v1386 = vsub.s32 %v1382, %v1385
        %vm1387 = vcmp.lt.s32.totalorder %v1386, 0
        %v1388 = vsub.s32 0, %v1386
        %v1389 = vsel %vm1387, %v1388, %v1386
        %v1390 = vclz %v1389
        %v1391 = vsub.s32 %v1390, 2
        %vm1392 = vcmp.gt.s32.totalorder 0, %v1391
        %v1393 = vsel %vm1392, 0, %v1391
        %v1394 = vsub.s32 32, %v1393
        %v1395 = vshll.u32 %v1386, %v1393
        %v1396 = vshrl.u32 %v1378, %v1394
        %v1397 = vor.u32 %v1395, %v1396
        %v1398 = vsub.s32 4294967266, %v1393
        %v1399 = vadd.s32 %v1398, 127
        %v1400 = vshll.u32 %v1399, 23
        %v1401 = vor.u32 4788187, %v1400
        %v1402 = vand.u32 2147483647, %v1401
        %v1404 = vcvt.s32.f32 %v1397
        %v1405 = vmul.f32 %v1404, %v1402
        %v1406 = vxor.u32 %v1405, 2147483648
        %v1407 = vsel %vm1286, %v1406, %v1405
        %v1408 = vsub.s32 4, %v1384
        %v1409 = vsel %vm1286, %v1408, %v1384
        %v1410 = vsel %vm1285, %v502, %v1407
        %v1411 = vsel %vm1285, 0, %v1409
        %v1412 = vmul.f32 %v1410, %v1410
        %v1413 = vmul.f32 %v1412, -0.001358992
        %v1414 = vadd.f32 %v1413, 0.041655596
        %v1415 = vmul.f32 %v1412, %v1414
        %v1416 = vadd.f32 %v1415, -0.4999988
        %v1417 = vmul.f32 %v1412, %v1416
        %v1418 = vadd.f32 1.0, %v1417
        %v1419 = vmul.f32 %v1410, %v1410
        %v1420 = vmul.f32 %v1419, -0.00019511016
        %v1421 = vadd.f32 %v1420, 0.008332121
        %v1422 = vmul.f32 %v1419, %v1421
        %v1423 = vadd.f32 %v1422, -0.16666654
        %v1424 = vmul.f32 %v1419, %v1423
        %v1425 = vadd.f32 %v1424, 1.0
        %v1426 = vmul.f32 %v1425, %v1410
        %vm1427 = vweird.f32 %v502
        %v1428 = vadd.s32 %v1411, 3
        %v1429 = vand.u32 %v1428, 3
        %vm1430 = vcmp.lt.s32.totalorder %v1429, 2
        %vm1431 = vcmp.eq.s32.totalorder %v1429, 0
        %v1432 = vxor.u32 %v1426, 2147483648
        %v1433 = vsel %vm1431, %v1418, %v1432
        %vm1434 = vcmp.eq.s32.totalorder %v1429, 2
        %v1435 = vxor.u32 %v1418, 2147483648
        %v1436 = vsel %vm1434, %v1435, %v1426
        %v1437 = vsel %vm1430, %v1433, %v1436
        %v1438 = vsel %vm1427, nan, %v1437
        %v1439 = vand.u32 2147483647, %v503
        %vm1440 = vcmp.le.f32.partialorder %v1439, 0.7853982
        %vm1441 = vcmp.lt.s32.totalorder %v503, 0
        %v1442 = vand.u32 %v503, 2139095040
        %v1443 = vshrl.u32 %v1442, 23
        %v1444 = vsub.s32 %v1443, 127
        %v1445 = vand.u32 2147483647, %v503
        %v1446 = vand.u32 %v1445, 8388607
        %v1447 = vor.u32 %v1446, 8388608
        %v1448 = vsub.s32 0, %v1447
        %v1449 = vadd.s32 %v1444, 1
        %vm1450 = vcmp.gt.s32.totalorder %v1449, 0
        %v1451 = vsel %vm1450, %v1449, 0
        %v1452 = vshrl.u32 %v1451, 5
        %v1453 = vand.u32 %v1451, 31
        %v1454 = vsub.s32 32, %v1453
        %v1455 = vshrl.u32 683565275, %v1454
        %v1456 = vshll.u32 683565275, %v1453
        %v1457 = vshrl.u32 2475754826, %v1454
        %v1458 = vor.u32 %v1456, %v1457
        %v1459 = vshll.u32 2475754826, %v1453
        %v1460 = vshrl.u32 2131351028, %v1454
        %v1461 = vor.u32 %v1459, %v1460
        %v1462 = vshll.u32 2131351028, %v1453
        %v1463 = vshrl.u32 2102212464, %v1454
        %v1464 = vor.u32 %v1462, %v1463
        %v1465 = vshll.u32 2102212464, %v1453
        %v1466 = vshrl.u32 920167782, %v1454
        %v1467 = vor.u32 %v1465, %v1466
        %v1468 = vshll.u32 920167782, %v1453
        %v1469 = vshrl.u32 1326507024, %v1454
        %v1470 = vor.u32 %v1468, %v1469
        %vm1471 = vcmp.lt.s32.totalorder %v1452, 1
        %vm1472 = vcmp.lt.s32.totalorder %v1452, 2
        %vm1473 = vcmp.lt.s32.totalorder %v1452, 3
        %vm1474 = vcmp.lt.s32.totalorder %v1452, 4
        %v1475 = vsel %vm1471, %v1455, %v1458
        %v1476 = vsel %vm1474, %v1464, 2102212464
        %v1477 = vsel %vm1473, %v1461, %v1476
        %v1478 = vsel %vm1472, %v1475, %v1477
        %v1479 = vsel %vm1471, %v1458, %v1461
        %v1480 = vsel %vm1474, %v1467, 920167782
        %v1481 = vsel %vm1473, %v1464, %v1480
        %v1482 = vsel %vm1472, %v1479, %v1481
        %v1483 = vsel %vm1471, %v1461, %v1464
        %v1484 = vsel %vm1474, %v1470, 1326507024
        %v1485 = vsel %vm1473, %v1467, %v1484
        %v1486 = vsel %vm1472, %v1483, %v1485
        %v1487 = vshll.u32 %v1447, 8
        %v1488 = vand.u32 %v1487, 65535
        %v1489 = vshrl.u32 %v1487, 16
        %v1490 = vand.u32 %v1486, 65535
        %v1491 = vshrl.u32 %v1486, 16
        %v1492 = vmul.u32 %v1488, %v1490
        %v1493 = vmul.u32 %v1488, %v1491
        %v1494 = vmul.u32 %v1489, %v1490
        %v1495 = vmul.u32 %v1489, %v1491
        %v1496 = vshll.u32 %v1493, 16
        %v1497 = vshrl.u32 %v1493, 16
        %v1498 = vshll.u32 %v1494, 16
        %v1499 = vshrl.u32 %v1494, 16
        %vm1500 = vc.u32 %v1492, %v1496
        %v1501 = vsel %vm1500, 1, 0
        %v1502 = vadd.s32 %v1492, %v1496
        %v1503 = vadd.s32 %v1495, %v1501
        %vm1504 = vc.u32 %v1502, %v1498
        %v1505 = vsel %vm1504, 1, 0
        %v1506 = vadd.s32 %v1502, %v1498
        %v1507 = vadd.s32 %v1503, %v1505
        %v1508 = vadd.s32 %v1507, %v1497
        %v1509 = vadd.s32 %v1508, %v1499
        %v1510 = vand.u32 %v1487, 65535
        %v1511 = vshrl.u32 %v1487, 16
        %v1512 = vand.u32 %v1482, 65535
        %v1513 = vshrl.u32 %v1482, 16
        %v1514 = vmul.u32 %v1510, %v1512
        %v1515 = vmul.u32 %v1510, %v1513
        %v1516 = vmul.u32 %v1511, %v1512
        %v1517 = vmul.u32 %v1511, %v1513
        %v1518 = vshll.u32 %v1515, 16
        %v1519 = vshrl.u32 %v1515, 16
        %v1520 = vshll.u32 %v1516, 16
        %v1521 = vshrl.u32 %v1516, 16
        %vm1522 = vc.u32 %v1514, %v1518
        %v1523 = vsel %vm1522, 1, 0
        %v1524 = vadd.s32 %v1514, %v1518
        %v1525 = vadd.s32 %v1517, %v1523
        %vm1526 = vc.u32 %v1524, %v1520
        %v1527 = vsel %vm1526, 1, 0
        %v1528 = vadd.s32 %v1524, %v1520
        %v1529 = vadd.s32 %v1525, %v1527
        %v1530 = vadd.s32 %v1529, %v1519
        %v1531 = vadd.s32 %v1530, %v1521
        %v1532 = vmul.u32 %v1487, %v1478
        %v1533 = vadd.s32 %v1509, %v1528
        %vm1534 = vc.u32 %v1509, %v1528
        %v1535 = vadd.s32 %v1531, 1
        %v1536 = vsel %vm1534, %v1535, %v1531
        %v1537 = vadd.s32 %v1532, %v1536
        %v1538 = vadd.s32 %v1537, 536870912
        %v1539 = vshrl.u32 %v1538, 30
        %v1540 = vshll.u32 %v1539, 30
        %v1541 = vsub.s32 %v1537, %v1540
        %vm1542 = vcmp.lt.s32.totalorder %v1541, 0
        %v1543 = vsub.s32 0, %v1541
        %v1544 = vsel %vm1542, %v1543, %v1541
        %v1545 = vclz %v1544
        %v1546 = vsub.s32 %v1545, 2
        %vm1547 = vcmp.gt.s32.totalorder 0, %v1546
        %v1548 = vsel %vm1547, 0, %v1546
        %v1549 = vsub.s32 32, %v1548
        %v1550 = vshll.u32 %v1541, %v1548
        %v1551 = vshrl.u32 %v1533, %v1549
        %v1552 = vor.u32 %v1550, %v1551
        %v1553 = vsub.s32 4294967266, %v1548
        %v1554 = vadd.s32 %v1553, 127
        %v1555 = vshll.u32 %v1554, 23
        %v1556 = vor.u32 4788187, %v1555
        %v1557 = vand.u32 2147483647, %v1556
        %v1559 = vcvt.s32.f32 %v1552
        %v1560 = vmul.f32 %v1559, %v1557
        %v1561 = vxor.u32 %v1560, 2147483648
        %v1562 = vsel %vm1441, %v1561, %v1560
        %v1563 = vsub.s32 4, %v1539
        %v1564 = vsel %vm1441, %v1563, %v1539
        %v1565 = vsel %vm1440, %v503, %v1562
        %v1566 = vsel %vm1440, 0, %v1564
        %v1567 = vmul.f32 %v1565, %v1565
        %v1568 = vmul.f32 %v1567, -0.001358992
        %v1569 = vadd.f32 %v1568, 0.041655596
        %v1570 = vmul.f32 %v1567, %v1569
        %v1571 = vadd.f32 %v1570, -0.4999988
        %v1572 = vmul.f32 %v1567, %v1571
        %v1573 = vadd.f32 1.0, %v1572
        %v1574 = vmul.f32 %v1565, %v1565
        %v1575 = vmul.f32 %v1574, -0.00019511016
        %v1576 = vadd.f32 %v1575, 0.008332121
        %v1577 = vmul.f32 %v1574, %v1576
        %v1578 = vadd.f32 %v1577, -0.16666654
        %v1579 = vmul.f32 %v1574, %v1578
        %v1580 = vadd.f32 %v1579, 1.0
        %v1581 = vmul.f32 %v1580, %v1565
        %vm1582 = vweird.f32 %v503
        %v1583 = vadd.s32 %v1566, 3
        %v1584 = vand.u32 %v1583, 3
        %vm1585 = vcmp.lt.s32.totalorder %v1584, 2
        %vm1586 = vcmp.eq.s32.totalorder %v1584, 0
        %v1587 = vxor.u32 %v1581, 2147483648
        %v1588 = vsel %vm1586, %v1573, %v1587
        %vm1589 = vcmp.eq.s32.totalorder %v1584, 2
        %v1590 = vxor.u32 %v1573, 2147483648
        %v1591 = vsel %vm1589, %v1590, %v1581
        %v1592 = vsel %vm1585, %v1588, %v1591
        %v1593 = vsel %vm1582, nan, %v1592
        %v1594 = vand.u32 2147483647, %v504
        %vm1595 = vcmp.le.f32.partialorder %v1594, 0.7853982
        %vm1596 = vcmp.lt.s32.totalorder %v504, 0
        %v1597 = vand.u32 %v504, 2139095040
        %v1598 = vshrl.u32 %v1597, 23
        %v1599 = vsub.s32 %v1598, 127
        %v1600 = vand.u32 2147483647, %v504
        %v1601 = vand.u32 %v1600, 8388607
        %v1602 = vor.u32 %v1601, 8388608
        %v1603 = vsub.s32 0, %v1602
        %v1604 = vadd.s32 %v1599, 1
        %vm1605 = vcmp.gt.s32.totalorder %v1604, 0
        %v1606 = vsel %vm1605, %v1604, 0
        %v1607 = vshrl.u32 %v1606, 5
        %v1608 = vand.u32 %v1606, 31
        %v1609 = vsub.s32 32, %v1608
        %v1610 = vshrl.u32 683565275, %v1609
        %v1611 = vshll.u32 683565275, %v1608
        %v1612 = vshrl.u32 2475754826, %v1609
        %v1613 = vor.u32 %v1611, %v1612
        %v1614 = vshll.u32 2475754826, %v1608
        %v1615 = vshrl.u32 2131351028, %v1609
        %v1616 = vor.u32 %v1614, %v1615
        %v1617 = vshll.u32 2131351028, %v1608
        %v1618 = vshrl.u32 2102212464, %v1609
        %v1619 = vor.u32 %v1617, %v1618
        %v1620 = vshll.u32 2102212464, %v1608
        %v1621 = vshrl.u32 920167782, %v1609
        %v1622 = vor.u32 %v1620, %v1621
        %v1623 = vshll.u32 920167782, %v1608
        %v1624 = vshrl.u32 1326507024, %v1609
        %v1625 = vor.u32 %v1623, %v1624
        %vm1626 = vcmp.lt.s32.totalorder %v1607, 1
        %vm1627 = vcmp.lt.s32.totalorder %v1607, 2
        %vm1628 = vcmp.lt.s32.totalorder %v1607, 3
        %vm1629 = vcmp.lt.s32.totalorder %v1607, 4
        %v1630 = vsel %vm1626, %v1610, %v1613
        %v1631 = vsel %vm1629, %v1619, 2102212464
        %v1632 = vsel %vm1628, %v1616, %v1631
        %v1633 = vsel %vm1627, %v1630, %v1632
        %v1634 = vsel %vm1626, %v1613, %v1616
        %v1635 = vsel %vm1629, %v1622, 920167782
        %v1636 = vsel %vm1628, %v1619, %v1635
        %v1637 = vsel %vm1627, %v1634, %v1636
        %v1638 = vsel %vm1626, %v1616, %v1619
        %v1639 = vsel %vm1629, %v1625, 1326507024
        %v1640 = vsel %vm1628, %v1622, %v1639
        %v1641 = vsel %vm1627, %v1638, %v1640
        %v1642 = vshll.u32 %v1602, 8
        %v1643 = vand.u32 %v1642, 65535
        %v1644 = vshrl.u32 %v1642, 16
        %v1645 = vand.u32 %v1641, 65535
        %v1646 = vshrl.u32 %v1641, 16
        %v1647 = vmul.u32 %v1643, %v1645
        %v1648 = vmul.u32 %v1643, %v1646
        %v1649 = vmul.u32 %v1644, %v1645
        %v1650 = vmul.u32 %v1644, %v1646
        %v1651 = vshll.u32 %v1648, 16
        %v1652 = vshrl.u32 %v1648, 16
        %v1653 = vshll.u32 %v1649, 16
        %v1654 = vshrl.u32 %v1649, 16
        %vm1655 = vc.u32 %v1647, %v1651
        %v1656 = vsel %vm1655, 1, 0
        %v1657 = vadd.s32 %v1647, %v1651
        %v1658 = vadd.s32 %v1650, %v1656
        %vm1659 = vc.u32 %v1657, %v1653
        %v1660 = vsel %vm1659, 1, 0
        %v1661 = vadd.s32 %v1657, %v1653
        %v1662 = vadd.s32 %v1658, %v1660
        %v1663 = vadd.s32 %v1662, %v1652
        %v1664 = vadd.s32 %v1663, %v1654
        %v1665 = vand.u32 %v1642, 65535
        %v1666 = vshrl.u32 %v1642, 16
        %v1667 = vand.u32 %v1637, 65535
        %v1668 = vshrl.u32 %v1637, 16
        %v1669 = vmul.u32 %v1665, %v1667
        %v1670 = vmul.u32 %v1665, %v1668
        %v1671 = vmul.u32 %v1666, %v1667
        %v1672 = vmul.u32 %v1666, %v1668
        %v1673 = vshll.u32 %v1670, 16
        %v1674 = vshrl.u32 %v1670, 16
        %v1675 = vshll.u32 %v1671, 16
        %v1676 = vshrl.u32 %v1671, 16
        %vm1677 = vc.u32 %v1669, %v1673
        %v1678 = vsel %vm1677, 1, 0
        %v1679 = vadd.s32 %v1669, %v1673
        %v1680 = vadd.s32 %v1672, %v1678
        %vm1681 = vc.u32 %v1679, %v1675
        %v1682 = vsel %vm1681, 1, 0
        %v1683 = vadd.s32 %v1679, %v1675
        %v1684 = vadd.s32 %v1680, %v1682
        %v1685 = vadd.s32 %v1684, %v1674
        %v1686 = vadd.s32 %v1685, %v1676
        %v1687 = vmul.u32 %v1642, %v1633
        %v1688 = vadd.s32 %v1664, %v1683
        %vm1689 = vc.u32 %v1664, %v1683
        %v1690 = vadd.s32 %v1686, 1
        %v1691 = vsel %vm1689, %v1690, %v1686
        %v1692 = vadd.s32 %v1687, %v1691
        %v1693 = vadd.s32 %v1692, 536870912
        %v1694 = vshrl.u32 %v1693, 30
        %v1695 = vshll.u32 %v1694, 30
        %v1696 = vsub.s32 %v1692, %v1695
        %vm1697 = vcmp.lt.s32.totalorder %v1696, 0
        %v1698 = vsub.s32 0, %v1696
        %v1699 = vsel %vm1697, %v1698, %v1696
        %v1700 = vclz %v1699
        %v1701 = vsub.s32 %v1700, 2
        %vm1702 = vcmp.gt.s32.totalorder 0, %v1701
        %v1703 = vsel %vm1702, 0, %v1701
        %v1704 = vsub.s32 32, %v1703
        %v1705 = vshll.u32 %v1696, %v1703
        %v1706 = vshrl.u32 %v1688, %v1704
        %v1707 = vor.u32 %v1705, %v1706
        %v1708 = vsub.s32 4294967266, %v1703
        %v1709 = vadd.s32 %v1708, 127
        %v1710 = vshll.u32 %v1709, 23
        %v1711 = vor.u32 4788187, %v1710
        %v1712 = vand.u32 2147483647, %v1711
        %v1714 = vcvt.s32.f32 %v1707
        %v1715 = vmul.f32 %v1714, %v1712
        %v1716 = vxor.u32 %v1715, 2147483648
        %v1717 = vsel %vm1596, %v1716, %v1715
        %v1718 = vsub.s32 4, %v1694
        %v1719 = vsel %vm1596, %v1718, %v1694
        %v1720 = vsel %vm1595, %v504, %v1717
        %v1721 = vsel %vm1595, 0, %v1719
        %v1722 = vmul.f32 %v1720, %v1720
        %v1723 = vmul.f32 %v1722, -0.001358992
        %v1724 = vadd.f32 %v1723, 0.041655596
        %v1725 = vmul.f32 %v1722, %v1724
        %v1726 = vadd.f32 %v1725, -0.4999988
        %v1727 = vmul.f32 %v1722, %v1726
        %v1728 = vadd.f32 1.0, %v1727
        %v1729 = vmul.f32 %v1720, %v1720
        %v1730 = vmul.f32 %v1729, -0.00019511016
        %v1731 = vadd.f32 %v1730, 0.008332121
        %v1732 = vmul.f32 %v1729, %v1731
        %v1733 = vadd.f32 %v1732, -0.16666654
        %v1734 = vmul.f32 %v1729, %v1733
        %v1735 = vadd.f32 %v1734, 1.0
        %v1736 = vmul.f32 %v1735, %v1720
        %vm1737 = vweird.f32 %v504
        %v1738 = vadd.s32 %v1721, 3
        %v1739 = vand.u32 %v1738, 3
        %vm1740 = vcmp.lt.s32.totalorder %v1739, 2
        %vm1741 = vcmp.eq.s32.totalorder %v1739, 0
        %v1742 = vxor.u32 %v1736, 2147483648
        %v1743 = vsel %vm1741, %v1728, %v1742
        %vm1744 = vcmp.eq.s32.totalorder %v1739, 2
        %v1745 = vxor.u32 %v1728, 2147483648
        %v1746 = vsel %vm1744, %v1745, %v1736
        %v1747 = vsel %vm1740, %v1743, %v1746
        %v1748 = vsel %vm1737, nan, %v1747
        %v1749 = vand.u32 2147483647, %v505
        %vm1750 = vcmp.le.f32.partialorder %v1749, 0.7853982
        %vm1751 = vcmp.lt.s32.totalorder %v505, 0
        %v1752 = vand.u32 %v505, 2139095040
        %v1753 = vshrl.u32 %v1752, 23
        %v1754 = vsub.s32 %v1753, 127
        %v1755 = vand.u32 2147483647, %v505
        %v1756 = vand.u32 %v1755, 8388607
        %v1757 = vor.u32 %v1756, 8388608
        %v1758 = vsub.s32 0, %v1757
        %v1759 = vadd.s32 %v1754, 1
        %vm1760 = vcmp.gt.s32.totalorder %v1759, 0
        %v1761 = vsel %vm1760, %v1759, 0
        %v1762 = vshrl.u32 %v1761, 5
        %v1763 = vand.u32 %v1761, 31
        %v1764 = vsub.s32 32, %v1763
        %v1765 = vshrl.u32 683565275, %v1764
        %v1766 = vshll.u32 683565275, %v1763
        %v1767 = vshrl.u32 2475754826, %v1764
        %v1768 = vor.u32 %v1766, %v1767
        %v1769 = vshll.u32 2475754826, %v1763
        %v1770 = vshrl.u32 2131351028, %v1764
        %v1771 = vor.u32 %v1769, %v1770
        %v1772 = vshll.u32 2131351028, %v1763
        %v1773 = vshrl.u32 2102212464, %v1764
        %v1774 = vor.u32 %v1772, %v1773
        %v1775 = vshll.u32 2102212464, %v1763
        %v1776 = vshrl.u32 920167782, %v1764
        %v1777 = vor.u32 %v1775, %v1776
        %v1778 = vshll.u32 920167782, %v1763
        %v1779 = vshrl.u32 1326507024, %v1764
        %v1780 = vor.u32 %v1778, %v1779
        %vm1781 = vcmp.lt.s32.totalorder %v1762, 1
        %vm1782 = vcmp.lt.s32.totalorder %v1762, 2
        %vm1783 = vcmp.lt.s32.totalorder %v1762, 3
        %vm1784 = vcmp.lt.s32.totalorder %v1762, 4
        %v1785 = vsel %vm1781, %v1765, %v1768
        %v1786 = vsel %vm1784, %v1774, 2102212464
        %v1787 = vsel %vm1783, %v1771, %v1786
        %v1788 = vsel %vm1782, %v1785, %v1787
        %v1789 = vsel %vm1781, %v1768, %v1771
        %v1790 = vsel %vm1784, %v1777, 920167782
        %v1791 = vsel %vm1783, %v1774, %v1790
        %v1792 = vsel %vm1782, %v1789, %v1791
        %v1793 = vsel %vm1781, %v1771, %v1774
        %v1794 = vsel %vm1784, %v1780, 1326507024
        %v1795 = vsel %vm1783, %v1777, %v1794
        %v1796 = vsel %vm1782, %v1793, %v1795
        %v1797 = vshll.u32 %v1757, 8
        %v1798 = vand.u32 %v1797, 65535
        %v1799 = vshrl.u32 %v1797, 16
        %v1800 = vand.u32 %v1796, 65535
        %v1801 = vshrl.u32 %v1796, 16
        %v1802 = vmul.u32 %v1798, %v1800
        %v1803 = vmul.u32 %v1798, %v1801
        %v1804 = vmul.u32 %v1799, %v1800
        %v1805 = vmul.u32 %v1799, %v1801
        %v1806 = vshll.u32 %v1803, 16
        %v1807 = vshrl.u32 %v1803, 16
        %v1808 = vshll.u32 %v1804, 16
        %v1809 = vshrl.u32 %v1804, 16
        %vm1810 = vc.u32 %v1802, %v1806
        %v1811 = vsel %vm1810, 1, 0
        %v1812 = vadd.s32 %v1802, %v1806
        %v1813 = vadd.s32 %v1805, %v1811
        %vm1814 = vc.u32 %v1812, %v1808
        %v1815 = vsel %vm1814, 1, 0
        %v1816 = vadd.s32 %v1812, %v1808
        %v1817 = vadd.s32 %v1813, %v1815
        %v1818 = vadd.s32 %v1817, %v1807
        %v1819 = vadd.s32 %v1818, %v1809
        %v1820 = vand.u32 %v1797, 65535
        %v1821 = vshrl.u32 %v1797, 16
        %v1822 = vand.u32 %v1792, 65535
        %v1823 = vshrl.u32 %v1792, 16
        %v1824 = vmul.u32 %v1820, %v1822
        %v1825 = vmul.u32 %v1820, %v1823
        %v1826 = vmul.u32 %v1821, %v1822
        %v1827 = vmul.u32 %v1821, %v1823
        %v1828 = vshll.u32 %v1825, 16
        %v1829 = vshrl.u32 %v1825, 16
        %v1830 = vshll.u32 %v1826, 16
        %v1831 = vshrl.u32 %v1826, 16
        %vm1832 = vc.u32 %v1824, %v1828
        %v1833 = vsel %vm1832, 1, 0
        %v1834 = vadd.s32 %v1824, %v1828
        %v1835 = vadd.s32 %v1827, %v1833
        %vm1836 = vc.u32 %v1834, %v1830
        %v1837 = vsel %vm1836, 1, 0
        %v1838 = vadd.s32 %v1834, %v1830
        %v1839 = vadd.s32 %v1835, %v1837
        %v1840 = vadd.s32 %v1839, %v1829
        %v1841 = vadd.s32 %v1840, %v1831
        %v1842 = vmul.u32 %v1797, %v1788
        %v1843 = vadd.s32 %v1819, %v1838
        %vm1844 = vc.u32 %v1819, %v1838
        %v1845 = vadd.s32 %v1841, 1
        %v1846 = vsel %vm1844, %v1845, %v1841
        %v1847 = vadd.s32 %v1842, %v1846
        %v1848 = vadd.s32 %v1847, 536870912
        %v1849 = vshrl.u32 %v1848, 30
        %v1850 = vshll.u32 %v1849, 30
        %v1851 = vsub.s32 %v1847, %v1850
        %vm1852 = vcmp.lt.s32.totalorder %v1851, 0
        %v1853 = vsub.s32 0, %v1851
        %v1854 = vsel %vm1852, %v1853, %v1851
        %v1855 = vclz %v1854
        %v1856 = vsub.s32 %v1855, 2
        %vm1857 = vcmp.gt.s32.totalorder 0, %v1856
        %v1858 = vsel %vm1857, 0, %v1856
        %v1859 = vsub.s32 32, %v1858
        %v1860 = vshll.u32 %v1851, %v1858
        %v1861 = vshrl.u32 %v1843, %v1859
        %v1862 = vor.u32 %v1860, %v1861
        %v1863 = vsub.s32 4294967266, %v1858
        %v1864 = vadd.s32 %v1863, 127
        %v1865 = vshll.u32 %v1864, 23
        %v1866 = vor.u32 4788187, %v1865
        %v1867 = vand.u32 2147483647, %v1866
        %v1869 = vcvt.s32.f32 %v1862
        %v1870 = vmul.f32 %v1869, %v1867
        %v1871 = vxor.u32 %v1870, 2147483648
        %v1872 = vsel %vm1751, %v1871, %v1870
        %v1873 = vsub.s32 4, %v1849
        %v1874 = vsel %vm1751, %v1873, %v1849
        %v1875 = vsel %vm1750, %v505, %v1872
        %v1876 = vsel %vm1750, 0, %v1874
        %v1877 = vmul.f32 %v1875, %v1875
        %v1878 = vmul.f32 %v1877, -0.001358992
        %v1879 = vadd.f32 %v1878, 0.041655596
        %v1880 = vmul.f32 %v1877, %v1879
        %v1881 = vadd.f32 %v1880, -0.4999988
        %v1882 = vmul.f32 %v1877, %v1881
        %v1883 = vadd.f32 1.0, %v1882
        %v1884 = vmul.f32 %v1875, %v1875
        %v1885 = vmul.f32 %v1884, -0.00019511016
        %v1886 = vadd.f32 %v1885, 0.008332121
        %v1887 = vmul.f32 %v1884, %v1886
        %v1888 = vadd.f32 %v1887, -0.16666654
        %v1889 = vmul.f32 %v1884, %v1888
        %v1890 = vadd.f32 %v1889, 1.0
        %v1891 = vmul.f32 %v1890, %v1875
        %vm1892 = vweird.f32 %v505
        %v1893 = vadd.s32 %v1876, 3
        %v1894 = vand.u32 %v1893, 3
        %vm1895 = vcmp.lt.s32.totalorder %v1894, 2
        %vm1896 = vcmp.eq.s32.totalorder %v1894, 0
        %v1897 = vxor.u32 %v1891, 2147483648
        %v1898 = vsel %vm1896, %v1883, %v1897
        %vm1899 = vcmp.eq.s32.totalorder %v1894, 2
        %v1900 = vxor.u32 %v1883, 2147483648
        %v1901 = vsel %vm1899, %v1900, %v1891
        %v1902 = vsel %vm1895, %v1898, %v1901
        %v1903 = vsel %vm1892, nan, %v1902
        %v1904 = vand.u32 2147483647, %v506
        %vm1905 = vcmp.le.f32.partialorder %v1904, 0.7853982
        %vm1906 = vcmp.lt.s32.totalorder %v506, 0
        %v1907 = vand.u32 %v506, 2139095040
        %v1908 = vshrl.u32 %v1907, 23
        %v1909 = vsub.s32 %v1908, 127
        %v1910 = vand.u32 2147483647, %v506
        %v1911 = vand.u32 %v1910, 8388607
        %v1912 = vor.u32 %v1911, 8388608
        %v1913 = vsub.s32 0, %v1912
        %v1914 = vadd.s32 %v1909, 1
        %vm1915 = vcmp.gt.s32.totalorder %v1914, 0
        %v1916 = vsel %vm1915, %v1914, 0
        %v1917 = vshrl.u32 %v1916, 5
        %v1918 = vand.u32 %v1916, 31
        %v1919 = vsub.s32 32, %v1918
        %v1920 = vshrl.u32 683565275, %v1919
        %v1921 = vshll.u32 683565275, %v1918
        %v1922 = vshrl.u32 2475754826, %v1919
        %v1923 = vor.u32 %v1921, %v1922
        %v1924 = vshll.u32 2475754826, %v1918
        %v1925 = vshrl.u32 2131351028, %v1919
        %v1926 = vor.u32 %v1924, %v1925
        %v1927 = vshll.u32 2131351028, %v1918
        %v1928 = vshrl.u32 2102212464, %v1919
        %v1929 = vor.u32 %v1927, %v1928
        %v1930 = vshll.u32 2102212464, %v1918
        %v1931 = vshrl.u32 920167782, %v1919
        %v1932 = vor.u32 %v1930, %v1931
        %v1933 = vshll.u32 920167782, %v1918
        %v1934 = vshrl.u32 1326507024, %v1919
        %v1935 = vor.u32 %v1933, %v1934
        %vm1936 = vcmp.lt.s32.totalorder %v1917, 1
        %vm1937 = vcmp.lt.s32.totalorder %v1917, 2
        %vm1938 = vcmp.lt.s32.totalorder %v1917, 3
        %vm1939 = vcmp.lt.s32.totalorder %v1917, 4
        %v1940 = vsel %vm1936, %v1920, %v1923
        %v1941 = vsel %vm1939, %v1929, 2102212464
        %v1942 = vsel %vm1938, %v1926, %v1941
        %v1943 = vsel %vm1937, %v1940, %v1942
        %v1944 = vsel %vm1936, %v1923, %v1926
        %v1945 = vsel %vm1939, %v1932, 920167782
        %v1946 = vsel %vm1938, %v1929, %v1945
        %v1947 = vsel %vm1937, %v1944, %v1946
        %v1948 = vsel %vm1936, %v1926, %v1929
        %v1949 = vsel %vm1939, %v1935, 1326507024
        %v1950 = vsel %vm1938, %v1932, %v1949
        %v1951 = vsel %vm1937, %v1948, %v1950
        %v1952 = vshll.u32 %v1912, 8
        %v1953 = vand.u32 %v1952, 65535
        %v1954 = vshrl.u32 %v1952, 16
        %v1955 = vand.u32 %v1951, 65535
        %v1956 = vshrl.u32 %v1951, 16
        %v1957 = vmul.u32 %v1953, %v1955
        %v1958 = vmul.u32 %v1953, %v1956
        %v1959 = vmul.u32 %v1954, %v1955
        %v1960 = vmul.u32 %v1954, %v1956
        %v1961 = vshll.u32 %v1958, 16
        %v1962 = vshrl.u32 %v1958, 16
        %v1963 = vshll.u32 %v1959, 16
        %v1964 = vshrl.u32 %v1959, 16
        %vm1965 = vc.u32 %v1957, %v1961
        %v1966 = vsel %vm1965, 1, 0
        %v1967 = vadd.s32 %v1957, %v1961
        %v1968 = vadd.s32 %v1960, %v1966
        %vm1969 = vc.u32 %v1967, %v1963
        %v1970 = vsel %vm1969, 1, 0
        %v1971 = vadd.s32 %v1967, %v1963
        %v1972 = vadd.s32 %v1968, %v1970
        %v1973 = vadd.s32 %v1972, %v1962
        %v1974 = vadd.s32 %v1973, %v1964
        %v1975 = vand.u32 %v1952, 65535
        %v1976 = vshrl.u32 %v1952, 16
        %v1977 = vand.u32 %v1947, 65535
        %v1978 = vshrl.u32 %v1947, 16
        %v1979 = vmul.u32 %v1975, %v1977
        %v1980 = vmul.u32 %v1975, %v1978
        %v1981 = vmul.u32 %v1976, %v1977
        %v1982 = vmul.u32 %v1976, %v1978
        %v1983 = vshll.u32 %v1980, 16
        %v1984 = vshrl.u32 %v1980, 16
        %v1985 = vshll.u32 %v1981, 16
        %v1986 = vshrl.u32 %v1981, 16
        %vm1987 = vc.u32 %v1979, %v1983
        %v1988 = vsel %vm1987, 1, 0
        %v1989 = vadd.s32 %v1979, %v1983
        %v1990 = vadd.s32 %v1982, %v1988
        %vm1991 = vc.u32 %v1989, %v1985
        %v1992 = vsel %vm1991, 1, 0
        %v1993 = vadd.s32 %v1989, %v1985
        %v1994 = vadd.s32 %v1990, %v1992
        %v1995 = vadd.s32 %v1994, %v1984
        %v1996 = vadd.s32 %v1995, %v1986
        %v1997 = vmul.u32 %v1952, %v1943
        %v1998 = vadd.s32 %v1974, %v1993
        %vm1999 = vc.u32 %v1974, %v1993
        %v2000 = vadd.s32 %v1996, 1
        %v2001 = vsel %vm1999, %v2000, %v1996
        %v2002 = vadd.s32 %v1997, %v2001
        %v2003 = vadd.s32 %v2002, 536870912
        %v2004 = vshrl.u32 %v2003, 30
        %v2005 = vshll.u32 %v2004, 30
        %v2006 = vsub.s32 %v2002, %v2005
        %vm2007 = vcmp.lt.s32.totalorder %v2006, 0
        %v2008 = vsub.s32 0, %v2006
        %v2009 = vsel %vm2007, %v2008, %v2006
        %v2010 = vclz %v2009
        %v2011 = vsub.s32 %v2010, 2
        %vm2012 = vcmp.gt.s32.totalorder 0, %v2011
        %v2013 = vsel %vm2012, 0, %v2011
        %v2014 = vsub.s32 32, %v2013
        %v2015 = vshll.u32 %v2006, %v2013
        %v2016 = vshrl.u32 %v1998, %v2014
        %v2017 = vor.u32 %v2015, %v2016
        %v2018 = vsub.s32 4294967266, %v2013
        %v2019 = vadd.s32 %v2018, 127
        %v2020 = vshll.u32 %v2019, 23
        %v2021 = vor.u32 4788187, %v2020
        %v2022 = vand.u32 2147483647, %v2021
        %v2024 = vcvt.s32.f32 %v2017
        %v2025 = vmul.f32 %v2024, %v2022
        %v2026 = vxor.u32 %v2025, 2147483648
        %v2027 = vsel %vm1906, %v2026, %v2025
        %v2028 = vsub.s32 4, %v2004
        %v2029 = vsel %vm1906, %v2028, %v2004
        %v2030 = vsel %vm1905, %v506, %v2027
        %v2031 = vsel %vm1905, 0, %v2029
        %v2032 = vmul.f32 %v2030, %v2030
        %v2033 = vmul.f32 %v2032, -0.001358992
        %v2034 = vadd.f32 %v2033, 0.041655596
        %v2035 = vmul.f32 %v2032, %v2034
        %v2036 = vadd.f32 %v2035, -0.4999988
        %v2037 = vmul.f32 %v2032, %v2036
        %v2038 = vadd.f32 1.0, %v2037
        %v2039 = vmul.f32 %v2030, %v2030
        %v2040 = vmul.f32 %v2039, -0.00019511016
        %v2041 = vadd.f32 %v2040, 0.008332121
        %v2042 = vmul.f32 %v2039, %v2041
        %v2043 = vadd.f32 %v2042, -0.16666654
        %v2044 = vmul.f32 %v2039, %v2043
        %v2045 = vadd.f32 %v2044, 1.0
        %v2046 = vmul.f32 %v2045, %v2030
        %vm2047 = vweird.f32 %v506
        %v2048 = vadd.s32 %v2031, 3
        %v2049 = vand.u32 %v2048, 3
        %vm2050 = vcmp.lt.s32.totalorder %v2049, 2
        %vm2051 = vcmp.eq.s32.totalorder %v2049, 0
        %v2052 = vxor.u32 %v2046, 2147483648
        %v2053 = vsel %vm2051, %v2038, %v2052
        %vm2054 = vcmp.eq.s32.totalorder %v2049, 2
        %v2055 = vxor.u32 %v2038, 2147483648
        %v2056 = vsel %vm2054, %v2055, %v2046
        %v2057 = vsel %vm2050, %v2053, %v2056
        %v2058 = vsel %vm2047, nan, %v2057
        %v2059 = vand.u32 2147483647, %v507
        %vm2060 = vcmp.le.f32.partialorder %v2059, 0.7853982
        %vm2061 = vcmp.lt.s32.totalorder %v507, 0
        %v2062 = vand.u32 %v507, 2139095040
        %v2063 = vshrl.u32 %v2062, 23
        %v2064 = vsub.s32 %v2063, 127
        %v2065 = vand.u32 2147483647, %v507
        %v2066 = vand.u32 %v2065, 8388607
        %v2067 = vor.u32 %v2066, 8388608
        %v2068 = vsub.s32 0, %v2067
        %v2069 = vadd.s32 %v2064, 1
        %vm2070 = vcmp.gt.s32.totalorder %v2069, 0
        %v2071 = vsel %vm2070, %v2069, 0
        %v2072 = vshrl.u32 %v2071, 5
        %v2073 = vand.u32 %v2071, 31
        %v2074 = vsub.s32 32, %v2073
        %v2075 = vshrl.u32 683565275, %v2074
        %v2076 = vshll.u32 683565275, %v2073
        %v2077 = vshrl.u32 2475754826, %v2074
        %v2078 = vor.u32 %v2076, %v2077
        %v2079 = vshll.u32 2475754826, %v2073
        %v2080 = vshrl.u32 2131351028, %v2074
        %v2081 = vor.u32 %v2079, %v2080
        %v2082 = vshll.u32 2131351028, %v2073
        %v2083 = vshrl.u32 2102212464, %v2074
        %v2084 = vor.u32 %v2082, %v2083
        %v2085 = vshll.u32 2102212464, %v2073
        %v2086 = vshrl.u32 920167782, %v2074
        %v2087 = vor.u32 %v2085, %v2086
        %v2088 = vshll.u32 920167782, %v2073
        %v2089 = vshrl.u32 1326507024, %v2074
        %v2090 = vor.u32 %v2088, %v2089
        %vm2091 = vcmp.lt.s32.totalorder %v2072, 1
        %vm2092 = vcmp.lt.s32.totalorder %v2072, 2
        %vm2093 = vcmp.lt.s32.totalorder %v2072, 3
        %vm2094 = vcmp.lt.s32.totalorder %v2072, 4
        %v2095 = vsel %vm2091, %v2075, %v2078
        %v2096 = vsel %vm2094, %v2084, 2102212464
        %v2097 = vsel %vm2093, %v2081, %v2096
        %v2098 = vsel %vm2092, %v2095, %v2097
        %v2099 = vsel %vm2091, %v2078, %v2081
        %v2100 = vsel %vm2094, %v2087, 920167782
        %v2101 = vsel %vm2093, %v2084, %v2100
        %v2102 = vsel %vm2092, %v2099, %v2101
        %v2103 = vsel %vm2091, %v2081, %v2084
        %v2104 = vsel %vm2094, %v2090, 1326507024
        %v2105 = vsel %vm2093, %v2087, %v2104
        %v2106 = vsel %vm2092, %v2103, %v2105
        %v2107 = vshll.u32 %v2067, 8
        %v2108 = vand.u32 %v2107, 65535
        %v2109 = vshrl.u32 %v2107, 16
        %v2110 = vand.u32 %v2106, 65535
        %v2111 = vshrl.u32 %v2106, 16
        %v2112 = vmul.u32 %v2108, %v2110
        %v2113 = vmul.u32 %v2108, %v2111
        %v2114 = vmul.u32 %v2109, %v2110
        %v2115 = vmul.u32 %v2109, %v2111
        %v2116 = vshll.u32 %v2113, 16
        %v2117 = vshrl.u32 %v2113, 16
        %v2118 = vshll.u32 %v2114, 16
        %v2119 = vshrl.u32 %v2114, 16
        %vm2120 = vc.u32 %v2112, %v2116
        %v2121 = vsel %vm2120, 1, 0
        %v2122 = vadd.s32 %v2112, %v2116
        %v2123 = vadd.s32 %v2115, %v2121
        %vm2124 = vc.u32 %v2122, %v2118
        %v2125 = vsel %vm2124, 1, 0
        %v2126 = vadd.s32 %v2122, %v2118
        %v2127 = vadd.s32 %v2123, %v2125
        %v2128 = vadd.s32 %v2127, %v2117
        %v2129 = vadd.s32 %v2128, %v2119
        %v2130 = vand.u32 %v2107, 65535
        %v2131 = vshrl.u32 %v2107, 16
        %v2132 = vand.u32 %v2102, 65535
        %v2133 = vshrl.u32 %v2102, 16
        %v2134 = vmul.u32 %v2130, %v2132
        %v2135 = vmul.u32 %v2130, %v2133
        %v2136 = vmul.u32 %v2131, %v2132
        %v2137 = vmul.u32 %v2131, %v2133
        %v2138 = vshll.u32 %v2135, 16
        %v2139 = vshrl.u32 %v2135, 16
        %v2140 = vshll.u32 %v2136, 16
        %v2141 = vshrl.u32 %v2136, 16
        %vm2142 = vc.u32 %v2134, %v2138
        %v2143 = vsel %vm2142, 1, 0
        %v2144 = vadd.s32 %v2134, %v2138
        %v2145 = vadd.s32 %v2137, %v2143
        %vm2146 = vc.u32 %v2144, %v2140
        %v2147 = vsel %vm2146, 1, 0
        %v2148 = vadd.s32 %v2144, %v2140
        %v2149 = vadd.s32 %v2145, %v2147
        %v2150 = vadd.s32 %v2149, %v2139
        %v2151 = vadd.s32 %v2150, %v2141
        %v2152 = vmul.u32 %v2107, %v2098
        %v2153 = vadd.s32 %v2129, %v2148
        %vm2154 = vc.u32 %v2129, %v2148
        %v2155 = vadd.s32 %v2151, 1
        %v2156 = vsel %vm2154, %v2155, %v2151
        %v2157 = vadd.s32 %v2152, %v2156
        %v2158 = vadd.s32 %v2157, 536870912
        %v2159 = vshrl.u32 %v2158, 30
        %v2160 = vshll.u32 %v2159, 30
        %v2161 = vsub.s32 %v2157, %v2160
        %vm2162 = vcmp.lt.s32.totalorder %v2161, 0
        %v2163 = vsub.s32 0, %v2161
        %v2164 = vsel %vm2162, %v2163, %v2161
        %v2165 = vclz %v2164
        %v2166 = vsub.s32 %v2165, 2
        %vm2167 = vcmp.gt.s32.totalorder 0, %v2166
        %v2168 = vsel %vm2167, 0, %v2166
        %v2169 = vsub.s32 32, %v2168
        %v2170 = vshll.u32 %v2161, %v2168
        %v2171 = vshrl.u32 %v2153, %v2169
        %v2172 = vor.u32 %v2170, %v2171
        %v2173 = vsub.s32 4294967266, %v2168
        %v2174 = vadd.s32 %v2173, 127
        %v2175 = vshll.u32 %v2174, 23
        %v2176 = vor.u32 4788187, %v2175
        %v2177 = vand.u32 2147483647, %v2176
        %v2179 = vcvt.s32.f32 %v2172
        %v2180 = vmul.f32 %v2179, %v2177
        %v2181 = vxor.u32 %v2180, 2147483648
        %v2182 = vsel %vm2061, %v2181, %v2180
        %v2183 = vsub.s32 4, %v2159
        %v2184 = vsel %vm2061, %v2183, %v2159
        %v2185 = vsel %vm2060, %v507, %v2182
        %v2186 = vsel %vm2060, 0, %v2184
        %v2187 = vmul.f32 %v2185, %v2185
        %v2188 = vmul.f32 %v2187, -0.001358992
        %v2189 = vadd.f32 %v2188, 0.041655596
        %v2190 = vmul.f32 %v2187, %v2189
        %v2191 = vadd.f32 %v2190, -0.4999988
        %v2192 = vmul.f32 %v2187, %v2191
        %v2193 = vadd.f32 1.0, %v2192
        %v2194 = vmul.f32 %v2185, %v2185
        %v2195 = vmul.f32 %v2194, -0.00019511016
        %v2196 = vadd.f32 %v2195, 0.008332121
        %v2197 = vmul.f32 %v2194, %v2196
        %v2198 = vadd.f32 %v2197, -0.16666654
        %v2199 = vmul.f32 %v2194, %v2198
        %v2200 = vadd.f32 %v2199, 1.0
        %v2201 = vmul.f32 %v2200, %v2185
        %vm2202 = vweird.f32 %v507
        %v2203 = vadd.s32 %v2186, 3
        %v2204 = vand.u32 %v2203, 3
        %vm2205 = vcmp.lt.s32.totalorder %v2204, 2
        %vm2206 = vcmp.eq.s32.totalorder %v2204, 0
        %v2207 = vxor.u32 %v2201, 2147483648
        %v2208 = vsel %vm2206, %v2193, %v2207
        %vm2209 = vcmp.eq.s32.totalorder %v2204, 2
        %v2210 = vxor.u32 %v2193, 2147483648
        %v2211 = vsel %vm2209, %v2210, %v2201
        %v2212 = vsel %vm2205, %v2208, %v2211
        %v2213 = vsel %vm2202, nan, %v2212
        %v2214 = vand.u32 2147483647, %v508
        %vm2215 = vcmp.le.f32.partialorder %v2214, 0.7853982
        %vm2216 = vcmp.lt.s32.totalorder %v508, 0
        %v2217 = vand.u32 %v508, 2139095040
        %v2218 = vshrl.u32 %v2217, 23
        %v2219 = vsub.s32 %v2218, 127
        %v2220 = vand.u32 2147483647, %v508
        %v2221 = vand.u32 %v2220, 8388607
        %v2222 = vor.u32 %v2221, 8388608
        %v2223 = vsub.s32 0, %v2222
        %v2224 = vadd.s32 %v2219, 1
        %vm2225 = vcmp.gt.s32.totalorder %v2224, 0
        %v2226 = vsel %vm2225, %v2224, 0
        %v2227 = vshrl.u32 %v2226, 5
        %v2228 = vand.u32 %v2226, 31
        %v2229 = vsub.s32 32, %v2228
        %v2230 = vshrl.u32 683565275, %v2229
        %v2231 = vshll.u32 683565275, %v2228
        %v2232 = vshrl.u32 2475754826, %v2229
        %v2233 = vor.u32 %v2231, %v2232
        %v2234 = vshll.u32 2475754826, %v2228
        %v2235 = vshrl.u32 2131351028, %v2229
        %v2236 = vor.u32 %v2234, %v2235
        %v2237 = vshll.u32 2131351028, %v2228
        %v2238 = vshrl.u32 2102212464, %v2229
        %v2239 = vor.u32 %v2237, %v2238
        %v2240 = vshll.u32 2102212464, %v2228
        %v2241 = vshrl.u32 920167782, %v2229
        %v2242 = vor.u32 %v2240, %v2241
        %v2243 = vshll.u32 920167782, %v2228
        %v2244 = vshrl.u32 1326507024, %v2229
        %v2245 = vor.u32 %v2243, %v2244
        %vm2246 = vcmp.lt.s32.totalorder %v2227, 1
        %vm2247 = vcmp.lt.s32.totalorder %v2227, 2
        %vm2248 = vcmp.lt.s32.totalorder %v2227, 3
        %vm2249 = vcmp.lt.s32.totalorder %v2227, 4
        %v2250 = vsel %vm2246, %v2230, %v2233
        %v2251 = vsel %vm2249, %v2239, 2102212464
        %v2252 = vsel %vm2248, %v2236, %v2251
        %v2253 = vsel %vm2247, %v2250, %v2252
        %v2254 = vsel %vm2246, %v2233, %v2236
        %v2255 = vsel %vm2249, %v2242, 920167782
        %v2256 = vsel %vm2248, %v2239, %v2255
        %v2257 = vsel %vm2247, %v2254, %v2256
        %v2258 = vsel %vm2246, %v2236, %v2239
        %v2259 = vsel %vm2249, %v2245, 1326507024
        %v2260 = vsel %vm2248, %v2242, %v2259
        %v2261 = vsel %vm2247, %v2258, %v2260
        %v2262 = vshll.u32 %v2222, 8
        %v2263 = vand.u32 %v2262, 65535
        %v2264 = vshrl.u32 %v2262, 16
        %v2265 = vand.u32 %v2261, 65535
        %v2266 = vshrl.u32 %v2261, 16
        %v2267 = vmul.u32 %v2263, %v2265
        %v2268 = vmul.u32 %v2263, %v2266
        %v2269 = vmul.u32 %v2264, %v2265
        %v2270 = vmul.u32 %v2264, %v2266
        %v2271 = vshll.u32 %v2268, 16
        %v2272 = vshrl.u32 %v2268, 16
        %v2273 = vshll.u32 %v2269, 16
        %v2274 = vshrl.u32 %v2269, 16
        %vm2275 = vc.u32 %v2267, %v2271
        %v2276 = vsel %vm2275, 1, 0
        %v2277 = vadd.s32 %v2267, %v2271
        %v2278 = vadd.s32 %v2270, %v2276
        %vm2279 = vc.u32 %v2277, %v2273
        %v2280 = vsel %vm2279, 1, 0
        %v2281 = vadd.s32 %v2277, %v2273
        %v2282 = vadd.s32 %v2278, %v2280
        %v2283 = vadd.s32 %v2282, %v2272
        %v2284 = vadd.s32 %v2283, %v2274
        %v2285 = vand.u32 %v2262, 65535
        %v2286 = vshrl.u32 %v2262, 16
        %v2287 = vand.u32 %v2257, 65535
        %v2288 = vshrl.u32 %v2257, 16
        %v2289 = vmul.u32 %v2285, %v2287
        %v2290 = vmul.u32 %v2285, %v2288
        %v2291 = vmul.u32 %v2286, %v2287
        %v2292 = vmul.u32 %v2286, %v2288
        %v2293 = vshll.u32 %v2290, 16
        %v2294 = vshrl.u32 %v2290, 16
        %v2295 = vshll.u32 %v2291, 16
        %v2296 = vshrl.u32 %v2291, 16
        %vm2297 = vc.u32 %v2289, %v2293
        %v2298 = vsel %vm2297, 1, 0
        %v2299 = vadd.s32 %v2289, %v2293
        %v2300 = vadd.s32 %v2292, %v2298
        %vm2301 = vc.u32 %v2299, %v2295
        %v2302 = vsel %vm2301, 1, 0
        %v2303 = vadd.s32 %v2299, %v2295
        %v2304 = vadd.s32 %v2300, %v2302
        %v2305 = vadd.s32 %v2304, %v2294
        %v2306 = vadd.s32 %v2305, %v2296
        %v2307 = vmul.u32 %v2262, %v2253
        %v2308 = vadd.s32 %v2284, %v2303
        %vm2309 = vc.u32 %v2284, %v2303
        %v2310 = vadd.s32 %v2306, 1
        %v2311 = vsel %vm2309, %v2310, %v2306
        %v2312 = vadd.s32 %v2307, %v2311
        %v2313 = vadd.s32 %v2312, 536870912
        %v2314 = vshrl.u32 %v2313, 30
        %v2315 = vshll.u32 %v2314, 30
        %v2316 = vsub.s32 %v2312, %v2315
        %vm2317 = vcmp.lt.s32.totalorder %v2316, 0
        %v2318 = vsub.s32 0, %v2316
        %v2319 = vsel %vm2317, %v2318, %v2316
        %v2320 = vclz %v2319
        %v2321 = vsub.s32 %v2320, 2
        %vm2322 = vcmp.gt.s32.totalorder 0, %v2321
        %v2323 = vsel %vm2322, 0, %v2321
        %v2324 = vsub.s32 32, %v2323
        %v2325 = vshll.u32 %v2316, %v2323
        %v2326 = vshrl.u32 %v2308, %v2324
        %v2327 = vor.u32 %v2325, %v2326
        %v2328 = vsub.s32 4294967266, %v2323
        %v2329 = vadd.s32 %v2328, 127
        %v2330 = vshll.u32 %v2329, 23
        %v2331 = vor.u32 4788187, %v2330
        %v2332 = vand.u32 2147483647, %v2331
        %v2334 = vcvt.s32.f32 %v2327
        %v2335 = vmul.f32 %v2334, %v2332
        %v2336 = vxor.u32 %v2335, 2147483648
        %v2337 = vsel %vm2216, %v2336, %v2335
        %v2338 = vsub.s32 4, %v2314
        %v2339 = vsel %vm2216, %v2338, %v2314
        %v2340 = vsel %vm2215, %v508, %v2337
        %v2341 = vsel %vm2215, 0, %v2339
        %v2342 = vmul.f32 %v2340, %v2340
        %v2343 = vmul.f32 %v2342, -0.001358992
        %v2344 = vadd.f32 %v2343, 0.041655596
        %v2345 = vmul.f32 %v2342, %v2344
        %v2346 = vadd.f32 %v2345, -0.4999988
        %v2347 = vmul.f32 %v2342, %v2346
        %v2348 = vadd.f32 1.0, %v2347
        %v2349 = vmul.f32 %v2340, %v2340
        %v2350 = vmul.f32 %v2349, -0.00019511016
        %v2351 = vadd.f32 %v2350, 0.008332121
        %v2352 = vmul.f32 %v2349, %v2351
        %v2353 = vadd.f32 %v2352, -0.16666654
        %v2354 = vmul.f32 %v2349, %v2353
        %v2355 = vadd.f32 %v2354, 1.0
        %v2356 = vmul.f32 %v2355, %v2340
        %vm2357 = vweird.f32 %v508
        %v2358 = vadd.s32 %v2341, 3
        %v2359 = vand.u32 %v2358, 3
        %vm2360 = vcmp.lt.s32.totalorder %v2359, 2
        %vm2361 = vcmp.eq.s32.totalorder %v2359, 0
        %v2362 = vxor.u32 %v2356, 2147483648
        %v2363 = vsel %vm2361, %v2348, %v2362
        %vm2364 = vcmp.eq.s32.totalorder %v2359, 2
        %v2365 = vxor.u32 %v2348, 2147483648
        %v2366 = vsel %vm2364, %v2365, %v2356
        %v2367 = vsel %vm2360, %v2363, %v2366
        %v2368 = vsel %vm2357, nan, %v2367
        %v2369 = vld [vmem:[%s336] sm:$0x1]
        %v2371 = vperm.slane %v2369, 0
        %v2373 = vld [vmem:[%s4] sm:$0xff]
        %v2374 = vld [vmem:[%s4 + $0x8] sm:$0xff]
        %v2375 = vld [vmem:[%s4 + $0x10] sm:$0xff]
        %v2376 = vld [vmem:[%s4 + $0x18] sm:$0xff]
        %v2377 = vld [vmem:[%s5] sm:$0xff]
        %v2378 = vld [vmem:[%s5 + $0x8] sm:$0xff]
        %v2379 = vld [vmem:[%s5 + $0x10] sm:$0xff]
        %v2380 = vld [vmem:[%s5 + $0x18] sm:$0xff]
        %2382 = vset.pattern.permute.xlu0 0
        %2383 = vperm.xlu0 %2382, %v2377
        %v2384 = vpop.permute.xlu0 %2383
        %2387 = vset.pattern.permute.xlu0 0
        %2388 = vperm.xlu0 %2387, %v2378
        %v2389 = vpop.permute.xlu0 %2388
        %2392 = vset.pattern.permute.xlu0 0
        %2393 = vperm.xlu0 %2392, %v2379
        %v2394 = vpop.permute.xlu0 %2393
        %2397 = vset.pattern.permute.xlu0 0
        %2398 = vperm.xlu0 %2397, %v2380
        %v2399 = vpop.permute.xlu0 %2398
        %vm2401 = vcmask 261120
        %v2403 = vsel %vm2401, %v2373, 0
        %v2406 = vsel %vm2401, %v2374, 0
        %v2409 = vsel %vm2401, %v2375, 0
        %v2412 = vsel %vm2401, %v2376, 0
        %2414 = vmatpush.msra.mxu0 0.0
        %2415 = vmatpush.msra.mxu0 0.0
        %2416 = vmatpush.msra.mxu0 0.0
        %2417 = vmatpush.msra.mxu0 0.0
        %2418 = vmatpush.msra.mxu0 0.0
        %2419 = vmatpush.msra.mxu0 0.0
        %2420 = vmatpush.msra.mxu0 0.0
        %2421 = vmatpush.msra.mxu0 0.0
        %2422 = vmatpush.msra.mxu0 0.0
        %2423 = vmatpush.msra.mxu0 0.0
        %2424 = vmatpush.msra.mxu0 0.0
        %2425 = vmatpush.msra.mxu0 0.0
        %2426 = vmatpush.msra.mxu0 %v1128
        %2427 = vmatpush.msra.mxu0 %v973
        %2428 = vmatpush.msra.mxu0 %v818
        %2429 = vmatpush.msra.mxu0 %v663
        %2430 = vmatmul.f32.gmra.mxu0 %v2403
        %v2431 = vpop.f32.mrf.mxu0
        %v2432 = vadd.f32 %v2384, %v2431
        %2433 = vmatmul.f32.gmra.mxu0 %v2406
        %v2434 = vpop.f32.mrf.mxu0
        %v2435 = vadd.f32 %v2389, %v2434
        %2436 = vmatmul.f32.gmra.mxu0 %v2409
        %v2437 = vpop.f32.mrf.mxu0
        %v2438 = vadd.f32 %v2394, %v2437
        %2439 = vmatmul.f32.gmra.mxu0 %v2412
        %v2440 = vpop.f32.mrf.mxu0
        %v2441 = vadd.f32 %v2399, %v2440
        %2442 = vdwg.mxu0
        %v2443 = vmul.f32 %v1283, %v2432
        %v2444 = vmul.f32 %v1438, %v2435
        %v2445 = vmul.f32 %v1593, %v2438
        %v2446 = vmul.f32 %v1748, %v2441
        %v2447 = vadd.f32 %v2443, %v2371
        %v2448 = vadd.f32 %v2444, %v2371
        %v2449 = vadd.f32 %v2445, %v2371
        %v2450 = vadd.f32 %v2446, %v2371
        %s2451 = scalar_lea.vmem %s4, 32
        %v2452 = vld [vmem:[%s2451] sm:$0xff]
        %v2453 = vld [vmem:[%s2451 + $0x8] sm:$0xff]
        %v2454 = vld [vmem:[%s2451 + $0x10] sm:$0xff]
        %v2455 = vld [vmem:[%s2451 + $0x18] sm:$0xff]
        %s2456 = scalar_lea.vmem %s5, 32
        %v2457 = vld [vmem:[%s2456] sm:$0xff]
        %v2458 = vld [vmem:[%s2456 + $0x8] sm:$0xff]
        %v2459 = vld [vmem:[%s2456 + $0x10] sm:$0xff]
        %v2460 = vld [vmem:[%s2456 + $0x18] sm:$0xff]
        %2462 = vset.pattern.permute.xlu0 0
        %2463 = vperm.xlu0 %2462, %v2457
        %v2464 = vpop.permute.xlu0 %2463
        %2467 = vset.pattern.permute.xlu0 0
        %2468 = vperm.xlu0 %2467, %v2458
        %v2469 = vpop.permute.xlu0 %2468
        %2472 = vset.pattern.permute.xlu0 0
        %2473 = vperm.xlu0 %2472, %v2459
        %v2474 = vpop.permute.xlu0 %2473
        %2477 = vset.pattern.permute.xlu0 0
        %2478 = vperm.xlu0 %2477, %v2460
        %v2479 = vpop.permute.xlu0 %2478
        %v2482 = vsel %vm2401, %v2452, 0
        %v2485 = vsel %vm2401, %v2453, 0
        %v2488 = vsel %vm2401, %v2454, 0
        %v2491 = vsel %vm2401, %v2455, 0
        %2493 = vmatpush.msra.mxu0 0.0
        %2494 = vmatpush.msra.mxu0 0.0
        %2495 = vmatpush.msra.mxu0 0.0
        %2496 = vmatpush.msra.mxu0 0.0
        %2497 = vmatpush.msra.mxu0 0.0
        %2498 = vmatpush.msra.mxu0 0.0
        %2499 = vmatpush.msra.mxu0 0.0
        %2500 = vmatpush.msra.mxu0 0.0
        %2501 = vmatpush.msra.mxu0 0.0
        %2502 = vmatpush.msra.mxu0 0.0
        %2503 = vmatpush.msra.mxu0 0.0
        %2504 = vmatpush.msra.mxu0 0.0
        %2505 = vmatpush.msra.mxu0 %v2450
        %2506 = vmatpush.msra.mxu0 %v2449
        %2507 = vmatpush.msra.mxu0 %v2448
        %2508 = vmatpush.msra.mxu0 %v2447
        %2509 = vmatmul.f32.gmra.mxu0 %v2482
        %v2510 = vpop.f32.mrf.mxu0
        %v2511 = vadd.f32 %v2464, %v2510
        %2512 = vmatmul.f32.gmra.mxu0 %v2485
        %v2513 = vpop.f32.mrf.mxu0
        %v2514 = vadd.f32 %v2469, %v2513
        %2515 = vmatmul.f32.gmra.mxu0 %v2488
        %v2516 = vpop.f32.mrf.mxu0
        %v2517 = vadd.f32 %v2474, %v2516
        %2518 = vmatmul.f32.gmra.mxu0 %v2491
        %v2519 = vpop.f32.mrf.mxu0
        %v2520 = vadd.f32 %v2479, %v2519
        %2521 = vdwg.mxu0
        %v2522 = vmul.f32 %v1903, %v2511
        %v2523 = vmul.f32 %v2058, %v2514
        %v2524 = vmul.f32 %v2213, %v2517
        %v2525 = vmul.f32 %v2368, %v2520
        %v2526 = vadd.f32 %v2522, %v2371
        %v2527 = vadd.f32 %v2523, %v2371
        %v2528 = vadd.f32 %v2524, %v2371
        %v2529 = vadd.f32 %v2525, %v2371
        %v2530 = vld [vmem:[%s6] sm:$0xff]
        %v2531 = vld [vmem:[%s6 + $0x8] sm:$0xff]
        %v2532 = vld [vmem:[%s7] sm:$0xff]
        %v2533 = vld [vmem:[%s7 + $0x8] sm:$0xff]
        %2535 = vset.pattern.permute.xlu0 0
        %2536 = vperm.xlu0 %2535, %v2532
        %v2537 = vpop.permute.xlu0 %2536
        %2540 = vset.pattern.permute.xlu0 0
        %2541 = vperm.xlu0 %2540, %v2533
        %v2542 = vpop.permute.xlu0 %2541
        %v2545 = vsel %vm2401, %v2530, 0
        %v2548 = vsel %vm2401, %v2531, 0
        %2550 = vmatpush.msra.mxu0 0.0
        %2551 = vmatpush.msra.mxu0 0.0
        %2552 = vmatpush.msra.mxu0 0.0
        %2553 = vmatpush.msra.mxu0 0.0
        %2554 = vmatpush.msra.mxu0 0.0
        %2555 = vmatpush.msra.mxu0 0.0
        %2556 = vmatpush.msra.mxu0 0.0
        %2557 = vmatpush.msra.mxu0 0.0
        %2558 = vmatpush.msra.mxu0 0.0
        %2559 = vmatpush.msra.mxu0 0.0
        %2560 = vmatpush.msra.mxu0 0.0
        %2561 = vmatpush.msra.mxu0 0.0
        %2562 = vmatpush.msra.mxu0 %v2529
        %2563 = vmatpush.msra.mxu0 %v2528
        %2564 = vmatpush.msra.mxu0 %v2527
        %2565 = vmatpush.msra.mxu0 %v2526
        %2566 = vmatmul.f32.gmra.mxu0 %v2545
        %v2567 = vpop.f32.mrf.mxu0
        %v2568 = vadd.f32 %v2537, %v2567
        %2569 = vmatmul.f32.gmra.mxu0 %v2548
        %v2570 = vpop.f32.mrf.mxu0
        %v2571 = vadd.f32 %v2542, %v2570
        %2572 = vdwg.mxu0
        %vm2573 = vcmask 523264
        %2574 = vst.msk [vmem:[%s327] sm:$0xff] %vm2573, %v2568
        %2575 = vst.msk [vmem:[%s327 + $0x8] sm:$0xff] %vm2573, %v2571
        %s2576 = sand.u32 %s224, 1
        %s2577 = scalar_lea.sflag [#allocation3], %s2576
        %s2578 = sand.u32 %s224, 1
        %s2579 = smul.addr %s2578, 16
        %s2580 = scalar_lea.vmem [#allocation2], %s2579
        // Predicated region
        $region53: #{tpu_custom_call.1} parent=51 // pred_check
          %p2581 = pneg %p234
        $region54: #{tpu_custom_call.1} parent=51 // pred_check_branch
          %2583 = sbr.rel (%p2581) target = $region56
        $region55: #{tpu_custom_call.1} parent=51 // pred_region
          %2585 = vsyncadd %s2577, 0
          %s2586 = smul.addr %s26, 2
          %s2587 = sadd.s32 %s27, %s2586
          %s2588 = smul.addr %s2587, 8
          %s2589 = scalar_lea.hbm %s8, %s2588
          %s2590 = sshll.u32 %s2580, 4
          %s2591 = int_to_ptr.vmem [resolvable:$true] %s2590
          %s2592 = sshll.u32 %s2589, 4
          %s2593 = int_to_ptr.hbm [resolvable:$true] %s2592
          %2598 = dma.vmem_to_hbm [thread:$0]  %s2591, 256, %s2593, %s2577, 128, 128, 8
        $region56: #{tpu_custom_call.1} parent=51 // pred_fallthru
          _
      $region52: #{tpu_custom_call.1} parent=5 // pred_fallthru
        _
      %p2599 = scmp.le.s32.totalorder 2, %s17
      // Predicated region
      $region57: #{tpu_custom_call.1} parent=5 // pred_check
        %p2600 = pneg %p2599
      $region58: #{tpu_custom_call.1} parent=5 // pred_check_branch
        %2602 = sbr.rel (%p2600) target = $region60
      $region59: #{tpu_custom_call.1} parent=5 // pred_region
        %s2603 = ssub.s32 %s17, 2
        // Predicated region
        $region61: #{tpu_custom_call.1} parent=59 // pred_check
          %p2604 = pneg %p240
        $region62: #{tpu_custom_call.1} parent=59 // pred_check_branch
          %2606 = sbr.rel (%p2604) target = $region64
        $region63: #{tpu_custom_call.1} parent=59 // pred_region
          %s2607 = sand.u32 %s225, 1
          %s2608 = scalar_lea.sflag [#allocation3], %s2607
          %s2609 = sand.u32 %s225, 1
          %s2610 = smul.addr %s2609, 16
          %s2611 = scalar_lea.vmem [#allocation2], %s2610
          %2613 = dma.done %s2608, 256
        $region64: #{tpu_custom_call.1} parent=59 // pred_fallthru
          _
      $region60: #{tpu_custom_call.1} parent=5 // pred_fallthru
        _
    $region6: #{tpu_custom_call.1} parent=1 // loop_footer
      %s21 = sadd.s32 1, %s17
    $region7: #{tpu_custom_call.1} parent=1 // loop_footer_branch
      %16 = sbr.rel target = $region3
    $region8: #{tpu_custom_call.1} parent=1 // loop_exit
      _
    %2614 = vsyncpa [#allocation3], 1
    %s2615 = scalar_lea.sflag [#allocation3], 1
    %2616 = vsyncpa %s2615, 1

</llo_original>
